<compile_context>
chip_gen: v5e
topology: v5e:2x2
jax: 0.10.0
libtpu: 0.0.40
codegen_flags: <defaults>
</compile_context>

<pallas_src>
import functools

import jax
import jax.numpy as jnp
from jax import lax
from jax.experimental import pallas as pl
from jax.experimental.pallas import tpu as pltpu


# ---------------------------------------------------------------------------
# helpers
# ---------------------------------------------------------------------------
def _largest_divisor_at_most(n, cap):
    cap = max(1, min(n, cap))
    while n % cap != 0:
        cap -= 1
    return cap


@functools.lru_cache(maxsize=None)
def _scoped_vmem_limit_bytes():
    """Explicit scoped-VMEM limit: half of physical, clamped to [16, 64] MiB.

    v5e/v6e (128 MiB physical) -> 64 MiB; v7x (64 MiB per TC) -> 32 MiB;
    fallback 32 MiB if the hardware query is unavailable.
    """
    cap = 64 << 20
    try:
        cap = int(getattr(pltpu.get_tpu_info(), "vmem_capacity_bytes", cap))
    except Exception:
        pass
    return int(min(max(cap // 2, 16 << 20), 64 << 20))


# ---------------------------------------------------------------------------
# Kernel 1: covariance pooling (Covpool.forward)
#   y = x @ I_hat @ x^T  ==  (1/M) x x^T - (1/M^2) (x 1)(x 1)^T
# Grid: (batch blocks, M tiles).  The gram accumulates into the resident f32
# output block; the row sum over M is kept ONLY in lane-dense (Bb, 1, C)
# layout (MXU matvec per step); the rank-1 correction is a one-off K=1 outer
# product at finalize.  I_hat is never materialized.
# ---------------------------------------------------------------------------
def _cov_pool_kernel(x_ref, y_ref, srow_ref, *, inv_m, m_total, tk, ragged):
    k = pl.program_id(1)

    @pl.when(k == 0)
    def _init():
        y_ref[...] = jnp.zeros_like(y_ref)
        srow_ref[...] = jnp.zeros_like(srow_ref)

    # Native-dtype HBM block; cast to f32 right after the load (numerics
    # identical to an f32 upcast in HBM but half the read bytes for bf16).
    x = x_ref[...].astype(jnp.float32)                     # (Bb, C, tk)

    if ragged:  # static: only emitted when tk does not divide M
        col = lax.broadcasted_iota(jnp.int32, x.shape, 2)
        x = jnp.where(col < (m_total - k * tk), x, 0.0)

    # Gram accumulation: x @ x^T, contracting the last dims (no explicit .T).
    y_ref[...] += lax.dot_general(
        x, x, (((2,), (2,)), ((0,), (0,))),
        preferred_element_type=jnp.float32)
    # Row sums over M, lane-dense layout via a (1 x tk) @ (tk x C) matvec.
    ones_row = jnp.ones((x.shape[0], 1, x.shape[2]), jnp.float32)
    srow_ref[...] += lax.dot_general(                      # (Bb, 1, C)
        ones_row, x, (((2,), (2,)), ((0,), (0,))),
        preferred_element_type=jnp.float32)

    @pl.when(k == pl.num_programs(1) - 1)
    def _finalize():
        s = srow_ref[...]                                  # (Bb, 1, C)
        # One-off K=1 outer product: outer[b, i, j] = s[b, i] * s[b, j].
        outer = lax.dot_general(
            s, s, (((1,), (1,)), ((0,), (0,))),
            preferred_element_type=jnp.float32)
        y_ref[...] = inv_m * y_ref[...] - (inv_m * inv_m) * outer


def cov_pool(x_bcm):
    """x_bcm: (B, C, M) float dtype -> (B, C, C) float32 covariance (Covpool)."""
    B, C, M = x_bcm.shape
    inv_m = 1.0 / float(M)
    itemsize = jnp.dtype(x_bcm.dtype).itemsize

    # M-contraction tile: whole M in one step when the input block is small,
    # else 512-wide tiles with the ragged tail masked in-kernel (no HBM pad).
    if C * M * itemsize <= (4 << 20):
        tk = M
    else:
        tk = min(512, M)
    nk = pl.cdiv(M, tk)
    ragged = (M % tk) != 0

    vmem_limit = _scoped_vmem_limit_bytes()
    # Per-batch VMEM: double-buffered input + f32 cast temp + output blocks /
    # matmul temps + the (1, C) scratch at its padded (8 x ceil(C,128)) size.
    lane_c = ((C + 127) // 128) * 128
    per_batch = (2 * C * tk * itemsize
                 + C * tk * 4
                 + 4 * C * C * 4
                 + 8 * lane_c * 4)
    budget = (vmem_limit * 3) // 4
    # Keep >= 2 batch-grid steps when possible so both v7x TensorCores get
    # work on the "parallel" axis (negligible cost on 1-TC v5e/v6e).
    cap = min(max(1, budget // per_batch), max(1, B // 2))
    bb = _largest_divisor_at_most(B, cap)

    kernel = functools.partial(_cov_pool_kernel, inv_m=inv_m, m_total=M,
                               tk=tk, ragged=ragged)
    # NOTE: for C < 128 the (bb, C, C) output block is lane-narrow (masked
    # partial stores); bb-packing is the mitigation used here.
    return pl.pallas_call(
        kernel,
        out_shape=jax.ShapeDtypeStruct((B, C, C), jnp.float32),
        grid_spec=pltpu.PrefetchScalarGridSpec(
            num_scalar_prefetch=0,
            grid=(B // bb, nk),
            in_specs=[pl.BlockSpec((bb, C, tk), lambda b, k: (b, 0, k))],
            out_specs=pl.BlockSpec((bb, C, C), lambda b, k: (b, 0, 0)),
            scratch_shapes=[pltpu.VMEM((bb, 1, C), jnp.float32)],
        ),
        compiler_params=pltpu.CompilerParams(
            dimension_semantics=("parallel", "arbitrary"),
            vmem_limit_bytes=vmem_limit),
    )(x_bcm)


# ---------------------------------------------------------------------------
# Kernel 2: ExponentialInverse + Power + attention + F.normalize + residual
#   out       = V diag(sqrt(d)) V^T
#   attention = out @ inverse_x^T = V diag(w) V^T,  w = sqrt(d) exp(-d)
#   ||attention||_F = ||w||_2 (V orthonormal), and the normalize / residual
#   tail reduces to  result = V diag(sqrt(d) * (1 + s)) V^T  with
#   s = max(||w||_2, 1e-12)  ->  ONE matmul; attention/inverse_x never built.
# ---------------------------------------------------------------------------
def _seb_attention_kernel(v_ref, d_ref, y_ref):
    v = v_ref[...]                                         # (Bb, C, C) eigvec columns
    d = d_ref[...]                                         # (Bb, 1, C) clamped eigvals

    w2 = d * jnp.exp(-2.0 * d)                             # w^2 (EUP exp + VPU mul)
    s = jnp.maximum(jnp.sqrt(jnp.sum(w2, axis=2, keepdims=True)), 1e-12)  # (Bb,1,1)
    coef = jnp.sqrt(d) * (1.0 + s)                         # (Bb, 1, C)

    # result = (V * coef) @ V^T   (contract last dims, no explicit .T)
    y_ref[...] = lax.dot_general(
        v * coef, v, (((2,), (2,)), ((0,), (0,))),
        preferred_element_type=jnp.float32)


def seb_attention(eig_vec, eig_vals):
    B, C, _ = eig_vec.shape
    d = eig_vals.reshape(B, 1, C).astype(jnp.float32)

    vmem_limit = _scoped_vmem_limit_bytes()
    lane_c = ((C + 127) // 128) * 128
    per_batch = (2 * C * C * 4          # input V (double-buffered)
                 + 4 * C * C * 4        # output blocks + (v*coef) / dot temps
                 + 2 * 8 * lane_c * 4)  # padded eigenvalue block
    budget = (vmem_limit * 3) // 4
    cap = min(max(1, budget // per_batch), max(1, B // 2))
    bb = _largest_divisor_at_most(B, cap)

    return pl.pallas_call(
        _seb_attention_kernel,
        out_shape=jax.ShapeDtypeStruct((B, C, C), jnp.float32),
        grid_spec=pltpu.PrefetchScalarGridSpec(
            num_scalar_prefetch=0,
            grid=(B // bb,),
            in_specs=[
                pl.BlockSpec((bb, C, C), lambda b: (b, 0, 0)),
                pl.BlockSpec((bb, 1, C), lambda b: (b, 0, 0)),
            ],
            out_specs=pl.BlockSpec((bb, C, C), lambda b: (b, 0, 0)),
        ),
        compiler_params=pltpu.CompilerParams(
            dimension_semantics=("parallel",),
            vmem_limit_bytes=vmem_limit),
    )(eig_vec.astype(jnp.float32), d)


# ---------------------------------------------------------------------------
# SEB.forward (is_vec=True, dimension_reduction=None => no conv_dr_block)
# ---------------------------------------------------------------------------
def seb_forward(x):
    B, C, H, W = x.shape
    # Keep the native activation dtype into cov_pool (kernel casts after load).
    x_bcm = x.reshape(B, C, H * W)

    cov = cov_pool(x_bcm)                                  # (B, C, C)  Covpool

    # Eigen_decomposition: torch.svd of a symmetric PSD matrix == eigh
    # (cheaper, and eigh's V is orthonormal, which kernel 2 relies on).
    # TODO(synk): PyTorch runs Covpool + SVD in float64 on CPU; no Pallas
    # eigensolver exists, so this stays in plain JAX at float32 (f32 eps clamp).
    eig_vals, eig_vec = jnp.linalg.eigh(cov)
    eps = jnp.finfo(jnp.float32).eps
    eig_vals = jnp.where(eig_vals <= eps, eps, eig_vals)   # eig_diag[<=eps] = eps

    res = seb_attention(eig_vec, eig_vals)                 # (B, C, C)

    # Triuvec: row-major upper-triangular gather -> (B, C*(C+1)/2, 1) float32
    r, c = jnp.triu_indices(C)
    flat_idx = r * C + c
    return res.reshape(B, C * C)[:, flat_idx][..., None].astype(jnp.float32)


# ---------------------------------------------------------------------------
# Pure-JAX (f32) mirror of the PyTorch forward, used to numerically validate
# the algebraic collapse of the F.normalize / residual tail.
# ---------------------------------------------------------------------------
def _seb_reference(x):
    B, C, H, W = x.shape
    M = H * W
    xm = x.astype(jnp.float32).reshape(B, C, M)
    i_hat = ((-1.0 / M / M) * jnp.ones((M, M), jnp.float32)
             + (1.0 / M) * jnp.eye(M, dtype=jnp.float32))
    cov = jnp.einsum("bcm,mn,bdn->bcd", xm, i_hat, xm)
    w, v = jnp.linalg.eigh(cov)
    eps = jnp.finfo(jnp.float32).eps
    w = jnp.where(w <= eps, eps, w)
    inverse_x = jnp.einsum("bij,bj,bkj->bik", v, jnp.exp(-w), v)
    out = jnp.einsum("bij,bj,bkj->bik", v, jnp.sqrt(w), v)
    attention = jnp.einsum("bij,bkj->bik", out, inverse_x)       # out @ inv^T
    flat = attention.reshape(B, -1)
    nrm = jnp.maximum(jnp.linalg.norm(flat, axis=1, keepdims=True), 1e-12)
    norm = (flat / nrm).reshape(B, C, C)
    attention = out * (attention / norm)
    res = attention + out
    r, c = jnp.triu_indices(C)
    return res.reshape(B, C * C)[:, r * C + c][..., None]


if __name__ == "__main__":
    key = jax.random.PRNGKey(0)
    B, C, H, W = 2, 8, 4, 4                                # small shapes, default SEB config
    x = jax.random.normal(key, (B, C, H, W), dtype=jnp.float32)

    out = jax.block_until_ready(jax.jit(seb_forward)(x))

    expected_dim = C * (C + 1) // 2
    assert out.shape == (B, expected_dim, 1), out.shape
    assert out.dtype == jnp.float32
    assert bool(jnp.all(jnp.isfinite(out)))

    # Validate the algebraic tail collapse against the straight PyTorch-formula
    # reference (same f32 precision / eigh on both sides).
    ref = jax.block_until_ready(jax.jit(_seb_reference)(x))
    assert bool(jnp.allclose(out, ref, rtol=5e-3, atol=5e-3)), (
        "max abs diff vs reference: %e" % float(jnp.max(jnp.abs(out - ref))))

    print("KERNEL_OK")
</pallas_src>

<mosaic_0001>
module attributes {stable_mosaic.version = 11 : i64} {
  func.func @_cov_pool_kernel(%arg0: i32, %arg1: i32, %arg2: memref<1x8x16xf32, #tpu.memory_space<vmem>>, %arg3: memref<1x8x8xf32, #tpu.memory_space<vmem>>, %arg4: memref<1x1x8xf32, #tpu.memory_space<vmem>>) attributes {dimension_semantics = [#tpu.dimension_semantics<parallel>, #tpu.dimension_semantics<arbitrary>], iteration_bounds = array<i64: 2, 1>, scalar_prefetch = 0 : i64, scratch_operands = 1 : i64, tpu.core_type = #tpu.core_type<tc>, window_params = [{transform_indices = @transform_0, window_bounds = array<i64: 1, 8, 16>}, {transform_indices = @transform_1, window_bounds = array<i64: 1, 8, 8>}]} {
    %c0_i32 = arith.constant 0 : i32
    %0 = arith.cmpi eq, %arg1, %c0_i32 : i32
    %1 = arith.extui %0 : i1 to i32
    %c0_i32_0 = arith.constant 0 : i32
    %2 = arith.cmpi ne, %1, %c0_i32_0 : i32
    scf.if %2 {
      %cst_19 = arith.constant 0.000000e+00 : f32
      %16 = vector.broadcast %cst_19 : f32 to vector<1x8x8xf32>
      %c0_20 = arith.constant 0 : index
      %c0_21 = arith.constant 0 : index
      %c0_22 = arith.constant 0 : index
      %17 = vector.load %arg3[%c0_20, %c0_21, %c0_22] : memref<1x8x8xf32, #tpu.memory_space<vmem>>, vector<1x8x8xf32>
      tpu.vector_store %arg3[%c0_20, %c0_21, %c0_22], %16 {strides = array<i32>} : memref<1x8x8xf32, #tpu.memory_space<vmem>>, vector<1x8x8xf32>,
      %cst_23 = arith.constant 0.000000e+00 : f32
      %18 = vector.broadcast %cst_23 : f32 to vector<1x1x8xf32>
      %c0_24 = arith.constant 0 : index
      %c0_25 = arith.constant 0 : index
      %c0_26 = arith.constant 0 : index
      %19 = vector.load %arg4[%c0_24, %c0_25, %c0_26] : memref<1x1x8xf32, #tpu.memory_space<vmem>>, vector<1x1x8xf32>
      tpu.vector_store %arg4[%c0_24, %c0_25, %c0_26], %18 {strides = array<i32>} : memref<1x1x8xf32, #tpu.memory_space<vmem>>, vector<1x1x8xf32>,
    } else {
    }
    %c0 = arith.constant 0 : index
    %c0_1 = arith.constant 0 : index
    %c0_2 = arith.constant 0 : index
    %3 = vector.load %arg2[%c0, %c0_1, %c0_2] : memref<1x8x16xf32, #tpu.memory_space<vmem>>, vector<1x8x16xf32>
    %c0_3 = arith.constant 0 : index
    %c0_4 = arith.constant 0 : index
    %c0_5 = arith.constant 0 : index
    %4 = vector.load %arg3[%c0_3, %c0_4, %c0_5] : memref<1x8x8xf32, #tpu.memory_space<vmem>>, vector<1x8x8xf32>
    %cst = arith.constant dense<0.000000e+00> : vector<1x8x8xf32>
    %5 = tpu.matmul %3, %3, %cst {dimension_numbers = #tpu.dot_dimension_numbers<[2], [2], [1], [1], [0, 0, 0, 1, 1, 1], [0], [0]>} : vector<1x8x16xf32>, vector<1x8x16xf32>, vector<1x8x8xf32> -> vector<1x8x8xf32>
    %6 = arith.addf %4, %5 : vector<1x8x8xf32>
    %c0_6 = arith.constant 0 : index
    %c0_7 = arith.constant 0 : index
    %c0_8 = arith.constant 0 : index
    %7 = vector.load %arg3[%c0_6, %c0_7, %c0_8] : memref<1x8x8xf32, #tpu.memory_space<vmem>>, vector<1x8x8xf32>
    tpu.vector_store %arg3[%c0_6, %c0_7, %c0_8], %6 {strides = array<i32>} : memref<1x8x8xf32, #tpu.memory_space<vmem>>, vector<1x8x8xf32>,
    %cst_9 = arith.constant 1.000000e+00 : f32
    %8 = vector.broadcast %cst_9 : f32 to vector<1x1x16xf32>
    %c0_10 = arith.constant 0 : index
    %c0_11 = arith.constant 0 : index
    %c0_12 = arith.constant 0 : index
    %9 = vector.load %arg4[%c0_10, %c0_11, %c0_12] : memref<1x1x8xf32, #tpu.memory_space<vmem>>, vector<1x1x8xf32>
    %cst_13 = arith.constant dense<0.000000e+00> : vector<1x1x8xf32>
    %10 = tpu.matmul %8, %3, %cst_13 {dimension_numbers = #tpu.dot_dimension_numbers<[2], [2], [1], [1], [0, 0, 0, 1, 1, 1], [0], [0]>} : vector<1x1x16xf32>, vector<1x8x16xf32>, vector<1x1x8xf32> -> vector<1x1x8xf32>
    %11 = arith.addf %9, %10 : vector<1x1x8xf32>
    %c0_14 = arith.constant 0 : index
    %c0_15 = arith.constant 0 : index
    %c0_16 = arith.constant 0 : index
    %12 = vector.load %arg4[%c0_14, %c0_15, %c0_16] : memref<1x1x8xf32, #tpu.memory_space<vmem>>, vector<1x1x8xf32>
    tpu.vector_store %arg4[%c0_14, %c0_15, %c0_16], %11 {strides = array<i32>} : memref<1x1x8xf32, #tpu.memory_space<vmem>>, vector<1x1x8xf32>,
    %c0_i32_17 = arith.constant 0 : i32
    %13 = arith.cmpi eq, %arg1, %c0_i32_17 : i32
    %14 = arith.extui %13 : i1 to i32
    %c0_i32_18 = arith.constant 0 : i32
    %15 = arith.cmpi ne, %14, %c0_i32_18 : i32
    scf.if %15 {
      %c0_19 = arith.constant 0 : index
      %c0_20 = arith.constant 0 : index
      %c0_21 = arith.constant 0 : index
      %16 = vector.load %arg4[%c0_19, %c0_20, %c0_21] : memref<1x1x8xf32, #tpu.memory_space<vmem>>, vector<1x1x8xf32>
      %cst_22 = arith.constant dense<0.000000e+00> : vector<1x8x8xf32>
      %17 = tpu.matmul %16, %16, %cst_22 {dimension_numbers = #tpu.dot_dimension_numbers<[1], [1], [2], [2], [0, 0, 0, 2, 1, 2], [0], [0]>} : vector<1x1x8xf32>, vector<1x1x8xf32>, vector<1x8x8xf32> -> vector<1x8x8xf32>
      %c0_23 = arith.constant 0 : index
      %c0_24 = arith.constant 0 : index
      %c0_25 = arith.constant 0 : index
      %18 = vector.load %arg3[%c0_23, %c0_24, %c0_25] : memref<1x8x8xf32, #tpu.memory_space<vmem>>, vector<1x8x8xf32>
      %cst_26 = arith.constant 6.250000e-02 : f32
      %19 = vector.broadcast %cst_26 : f32 to vector<1x8x8xf32>
      %20 = arith.mulf %19, %18 : vector<1x8x8xf32>
      %cst_27 = arith.constant 3.906250e-03 : f32
      %21 = vector.broadcast %cst_27 : f32 to vector<1x8x8xf32>
      %22 = arith.mulf %21, %17 : vector<1x8x8xf32>
      %23 = arith.subf %20, %22 : vector<1x8x8xf32>
      %c0_28 = arith.constant 0 : index
      %c0_29 = arith.constant 0 : index
      %c0_30 = arith.constant 0 : index
      %24 = vector.load %arg3[%c0_28, %c0_29, %c0_30] : memref<1x8x8xf32, #tpu.memory_space<vmem>>, vector<1x8x8xf32>
      tpu.vector_store %arg3[%c0_28, %c0_29, %c0_30], %23 {strides = array<i32>} : memref<1x8x8xf32, #tpu.memory_space<vmem>>, vector<1x8x8xf32>,
    } else {
    }
    return
  }
  func.func @transform_0(%arg0: i32, %arg1: i32) -> (i32, i32, i32) {
    %c0_i32 = arith.constant 0 : i32
    %c0_i32_0 = arith.constant 0 : i32
    return %arg0, %c0_i32, %arg1 : i32, i32, i32
  }
  func.func @transform_1(%arg0: i32, %arg1: i32) -> (i32, i32, i32) {
    %c0_i32 = arith.constant 0 : i32
    %c0_i32_0 = arith.constant 0 : i32
    %c0_i32_1 = arith.constant 0 : i32
    return %arg0, %c0_i32, %c0_i32_0 : i32, i32, i32
  }
}

module attributes {stable_mosaic.version = 11 : i64} {
  func.func @_seb_attention_kernel(%arg0: i32, %arg1: memref<1x8x8xf32, #tpu.memory_space<vmem>>, %arg2: memref<1x1x8xf32, #tpu.memory_space<vmem>>, %arg3: memref<1x8x8xf32, #tpu.memory_space<vmem>>) attributes {dimension_semantics = [#tpu.dimension_semantics<parallel>], iteration_bounds = array<i64: 2>, scalar_prefetch = 0 : i64, scratch_operands = 0 : i64, tpu.core_type = #tpu.core_type<tc>, window_params = [{transform_indices = @transform_0, window_bounds = array<i64: 1, 8, 8>}, {transform_indices = @transform_1, window_bounds = array<i64: 1, 1, 8>}, {transform_indices = @transform_2, window_bounds = array<i64: 1, 8, 8>}]} {
    %c0 = arith.constant 0 : index
    %c0_0 = arith.constant 0 : index
    %c0_1 = arith.constant 0 : index
    %0 = vector.load %arg1[%c0, %c0_0, %c0_1] : memref<1x8x8xf32, #tpu.memory_space<vmem>>, vector<1x8x8xf32>
    %c0_2 = arith.constant 0 : index
    %c0_3 = arith.constant 0 : index
    %c0_4 = arith.constant 0 : index
    %1 = vector.load %arg2[%c0_2, %c0_3, %c0_4] : memref<1x1x8xf32, #tpu.memory_space<vmem>>, vector<1x1x8xf32>
    %cst = arith.constant -2.000000e+00 : f32
    %2 = vector.broadcast %cst : f32 to vector<1x1x8xf32>
    %3 = arith.mulf %2, %1 : vector<1x1x8xf32>
    %4 = math.exp %3 : vector<1x1x8xf32>
    %5 = arith.mulf %1, %4 : vector<1x1x8xf32>
    %cst_5 = arith.constant dense<0.000000e+00> : vector<1x1xf32>
    %6 = vector.multi_reduction <add>, %5, %cst_5 [2] : vector<1x1x8xf32> to vector<1x1xf32>
    %7 = vector.shape_cast %6 : vector<1x1xf32> to vector<1x1x1xf32>
    %8 = math.sqrt %7 : vector<1x1x1xf32>
    %cst_6 = arith.constant 9.99999996E-13 : f32
    %9 = vector.broadcast %cst_6 : f32 to vector<1x1x1xf32>
    %10 = arith.maximumf %8, %9 : vector<1x1x1xf32>
    %11 = math.sqrt %1 : vector<1x1x8xf32>
    %cst_7 = arith.constant 1.000000e+00 : f32
    %12 = vector.broadcast %cst_7 : f32 to vector<1x1x1xf32>
    %13 = arith.addf %12, %10 : vector<1x1x1xf32>
    %14 = vector.broadcast %13 : vector<1x1x1xf32> to vector<1x1x8xf32>
    %15 = arith.mulf %11, %14 : vector<1x1x8xf32>
    %16 = vector.broadcast %15 : vector<1x1x8xf32> to vector<1x8x8xf32>
    %17 = arith.mulf %0, %16 : vector<1x8x8xf32>
    %cst_8 = arith.constant dense<0.000000e+00> : vector<1x8x8xf32>
    %18 = tpu.matmul %17, %0, %cst_8 {dimension_numbers = #tpu.dot_dimension_numbers<[2], [2], [1], [1], [0, 0, 0, 1, 1, 1], [0], [0]>} : vector<1x8x8xf32>, vector<1x8x8xf32>, vector<1x8x8xf32> -> vector<1x8x8xf32>
    %c0_9 = arith.constant 0 : index
    %c0_10 = arith.constant 0 : index
    %c0_11 = arith.constant 0 : index
    %19 = vector.load %arg3[%c0_9, %c0_10, %c0_11] : memref<1x8x8xf32, #tpu.memory_space<vmem>>, vector<1x8x8xf32>
    tpu.vector_store %arg3[%c0_9, %c0_10, %c0_11], %18 {strides = array<i32>} : memref<1x8x8xf32, #tpu.memory_space<vmem>>, vector<1x8x8xf32>,
    return
  }
  func.func @transform_0(%arg0: i32) -> (i32, i32, i32) {
    %c0_i32 = arith.constant 0 : i32
    %c0_i32_0 = arith.constant 0 : i32
    %c0_i32_1 = arith.constant 0 : i32
    return %arg0, %c0_i32, %c0_i32_0 : i32, i32, i32
  }
  func.func @transform_1(%arg0: i32) -> (i32, i32, i32) {
    %c0_i32 = arith.constant 0 : i32
    %c0_i32_0 = arith.constant 0 : i32
    %c0_i32_1 = arith.constant 0 : i32
    return %arg0, %c0_i32, %c0_i32_0 : i32, i32, i32
  }
  func.func @transform_2(%arg0: i32) -> (i32, i32, i32) {
    %c0_i32 = arith.constant 0 : i32
    %c0_i32_0 = arith.constant 0 : i32
    %c0_i32_1 = arith.constant 0 : i32
    return %arg0, %c0_i32, %c0_i32_0 : i32, i32, i32
  }
}

</mosaic_0001>

<llo_original>
// kernel: custom-call.2
$region0: #{custom-call.2}
  %s0 = inlined_call_operand.vmem [shape: f32[2,4,4], index: 0, kind: input, shape index: {}]
  %s1 = inlined_call_operand.vmem [shape: f32[2,4,4], index: 1, kind: input, shape index: {}]
  %s2 = inlined_call_operand.vmem [shape: f32[2,4,4], index: 2, kind: input, shape index: {}]
  %s3 = inlined_call_operand.vmem [shape: f32[2,4,4], index: 3, kind: input, shape index: {}]
  %s4 = inlined_call_operand.vmem [shape: f32[2,4], index: 4, kind: output, shape index: {0}]
  %s5 = inlined_call_operand.vmem [shape: f32[2,4], index: 5, kind: output, shape index: {1}]
  %s6 = inlined_call_operand.vmem [shape: f32[2,4,4], index: 6, kind: output, shape index: {2}]
  %s7 = inlined_call_operand.vmem [shape: f32[2,4,4], index: 7, kind: output, shape index: {3}]
  %s8 = inlined_call_operand.vmem [shape: f32[2,4,4], index: 8, kind: output, shape index: {4}]
  %s9 = inlined_call_operand.vmem [shape: f32[2,4,4], index: 9, kind: output, shape index: {5}]
  %10 = xla_tuple %s4, %s5, %s6, %s7, %s8, %s9
  $region1: #{custom-call.2} parent=0
    #allocation0 [shape = 'u8[4096]{0}', space=vmem, size = 0x1000, scoped, tag = 'operand span for operand 0']
    #allocation1 [shape = 'u8[4096]{0}', space=vmem, size = 0x1000, scoped, tag = 'packed  for operand 0']
    #allocation2 [shape = 'u8[4096]{0}', space=vmem, size = 0x1000, scoped, tag = 'operand span for operand 1']
    #allocation3 [shape = 'u8[4096]{0}', space=vmem, size = 0x1000, scoped, tag = 'packed  for operand 1']
    #allocation4 [shape = 'u8[4096]{0}', space=vmem, size = 0x1000, scoped, tag = 'operand span for operand 2']
    #allocation5 [shape = 'u8[4096]{0}', space=vmem, size = 0x1000, scoped, tag = 'packed  for operand 2']
    #allocation6 [shape = 'u8[4096]{0}', space=vmem, size = 0x1000, scoped, tag = 'operand span for operand 3']
    #allocation7 [shape = 'u8[4096]{0}', space=vmem, size = 0x1000, scoped, tag = 'packed  for operand 3']
    #allocation8 [shape = 'u8[4096]{0}', space=vmem, size = 0x1000, scoped, tag = 'operand span for operand 4']
    #allocation9 [shape = 'u8[2048]{0}', space=vmem, size = 0x800, scoped, tag = 'packed  for operand 4']
    #allocation10 [shape = 'u8[4096]{0}', space=vmem, size = 0x1000, scoped, tag = 'operand span for operand 5']
    #allocation11 [shape = 'u8[2048]{0}', space=vmem, size = 0x800, scoped, tag = 'packed  for operand 5']
    #allocation12 [shape = 'u8[4096]{0}', space=vmem, size = 0x1000, scoped, tag = 'operand span for operand 6']
    #allocation13 [shape = 'u8[4096]{0}', space=vmem, size = 0x1000, scoped, tag = 'packed  for operand 6']
    #allocation14 [shape = 'u8[4096]{0}', space=vmem, size = 0x1000, scoped, tag = 'operand span for operand 7']
    #allocation15 [shape = 'u8[4096]{0}', space=vmem, size = 0x1000, scoped, tag = 'packed  for operand 7']
    #allocation16 [shape = 'u8[4096]{0}', space=vmem, size = 0x1000, scoped, tag = 'operand span for operand 8']
    #allocation17 [shape = 'u8[4096]{0}', space=vmem, size = 0x1000, scoped, tag = 'packed  for operand 8']
    #allocation18 [shape = 'u8[4096]{0}', space=vmem, size = 0x1000, scoped, tag = 'operand span for operand 9']
    #allocation19 [shape = 'u8[4096]{0}', space=vmem, size = 0x1000, scoped, tag = 'packed  for operand 9']
    loop: start=0, step=1, limit=4
    $region2: #{custom-call.2} parent=1 // loop_pre_header
      _
    $region3: #{custom-call.2} parent=1 // loop_header
      %s12 = sphi 0, %s16
      %p13 = scmp.ge.s32.totalorder %s12, 4
      %s24 = sphi 0, %s26
      %s27 = sphi 0, %s24
      %s28 = sphi 0, %s27
      %s44 = sphi 0, %s28
      %s52 = sphi 0, %s54
      %s55 = sphi 0, %s52
      %s56 = sphi 0, %s55
      %s72 = sphi 0, %s56
    $region4: #{custom-call.2} parent=1 // loop_header_branch
      %15 = sbr.rel (%p13) target = $region8
    $region5: #{custom-call.2} parent=1 // loop_body
      %s17 = ssub.s32 %s12, 1
      %s18 = ssub.s32 %s12, 2
      %s19 = sadd.s32 %s12, 1
      %s20 = sshrl.u32 %s12, 3
      %s21 = sshrl.u32 %s19, 3
      %s22 = ssub.s32 %s20, %s21
      %p23 = scmp.eq.s32.totalorder %s22, 0
      %s25 = sadd.s32 %s24, 1
      %s26 = scalar_select %p23, %s24, %s25
      %p29 = pneg %p23
      %p30 = scmp.eq.s32.totalorder %s12, 1
      %p31 = por %p29, %p30
      %p32 = scmp.ne.s32.totalorder %s24, %s27
      %p33 = scmp.eq.s32.totalorder %s12, 0
      %p34 = por %p32, %p33
      %p35 = scmp.ne.s32.totalorder %s24, %s27
      %p36 = scmp.eq.s32.totalorder %s17, 1
      %p37 = por %p35, %p36
      %p38 = scmp.ne.s32.totalorder %s27, %s28
      %p39 = scmp.eq.s32.totalorder %s17, 0
      %p40 = por %p38, %p39
      %p41 = scmp.ne.s32.totalorder %s27, %s28
      %p42 = scmp.eq.s32.totalorder %s18, 1
      %p43 = por %p41, %p42
      %p45 = scmp.ne.s32.totalorder %s28, %s44
      %p46 = scmp.eq.s32.totalorder %s18, 0
      %p47 = por %p45, %p46
      %s48 = sshrl.u32 %s12, 3
      %s49 = sshrl.u32 %s19, 3
      %s50 = ssub.s32 %s48, %s49
      %p51 = scmp.eq.s32.totalorder %s50, 0
      %s53 = sadd.s32 %s52, 1
      %s54 = scalar_select %p51, %s52, %s53
      %p57 = pneg %p51
      %p58 = scmp.eq.s32.totalorder %s12, 1
      %p59 = por %p57, %p58
      %p60 = scmp.ne.s32.totalorder %s52, %s55
      %p61 = scmp.eq.s32.totalorder %s12, 0
      %p62 = por %p60, %p61
      %p63 = scmp.ne.s32.totalorder %s52, %s55
      %p64 = scmp.eq.s32.totalorder %s17, 1
      %p65 = por %p63, %p64
      %p66 = scmp.ne.s32.totalorder %s55, %s56
      %p67 = scmp.eq.s32.totalorder %s17, 0
      %p68 = por %p66, %p67
      %p69 = scmp.ne.s32.totalorder %s55, %s56
      %p70 = scmp.eq.s32.totalorder %s18, 1
      %p71 = por %p69, %p70
      %p73 = scmp.ne.s32.totalorder %s56, %s72
      %p74 = scmp.eq.s32.totalorder %s18, 0
      %p75 = por %p73, %p74
      %p76 = scmp.le.s32.totalorder 1, %s12
      %p77 = scmp.lt.s32.totalorder %s12, 3
      %p78 = pnand %p76, %p77
      %p79 = pneg %p78
      // Predicated region
      $region9: #{custom-call.2} parent=5 // pred_check
        _
      $region10: #{custom-call.2} parent=5 // pred_check_branch
        %81 = sbr.rel (%p78) target = $region12
      $region11: #{custom-call.2} parent=5 // pred_region
        %s82 = ssub.s32 %s12, 1
      $region12: #{custom-call.2} parent=5 // pred_fallthru
        _
      %p83 = scmp.lt.s32.totalorder %s12, 2
      // Predicated region
      $region13: #{custom-call.2} parent=5 // pred_check
        %p84 = pneg %p83
      $region14: #{custom-call.2} parent=5 // pred_check_branch
        %86 = sbr.rel (%p84) target = $region16
      $region15: #{custom-call.2} parent=5 // pred_region
        %s87 = sand.u32 %s12, 1
        %s88 = sand.u32 %s12, 1
        %s89 = smul.addr %s88, 4
        %s90 = scalar_lea.vmem [#allocation1], %s89
        %s91 = smul.addr %s12, 4
        %s92 = scalar_lea.vmem %s0, %s91
        // Predicated region
        $region17: #{custom-call.2} parent=15 // pred_check
          _
        $region18: #{custom-call.2} parent=15 // pred_check_branch
          %94 = sbr.rel (0) target = $region20
        $region19: #{custom-call.2} parent=15 // pred_region
          // Predicated region
          $region21: #{custom-call.2} parent=19 // pred_check
            _
          $region22: #{custom-call.2} parent=19 // pred_check_branch
            %96 = sbr.rel target = $region24
          $region23: #{custom-call.2} parent=19 // pred_region
            // Predicated region
            $region36: #{custom-call.2} parent=23 // pred_check
              _
            $region37: #{custom-call.2} parent=23 // pred_check_branch
              %112 = sbr.rel (0) target = $region39
            $region38: #{custom-call.2} parent=23 // pred_region
              %s114 = ssub.s32 16, 1
              loop: start=0, step=1, limit=1
              $region40: #{custom-call.2} parent=38 // loop_pre_header
                _
              $region41: #{custom-call.2} parent=38 // loop_header
                %s116 = sphi 0, %s120
                %p117 = scmp.ge.s32.totalorder %s116, 1
                %s121 = sphi %s92, %s92
                %s122 = sphi %s90, %s90
              $region42: #{custom-call.2} parent=38 // loop_header_branch
                %119 = sbr.rel (%p117) target = $region46
              $region43: #{custom-call.2} parent=38 // loop_body
                %v123 = vld [vmem:[%s121] sm:%s114]
                %124 = vst [vmem:[%s122] sm:%s114] %v123
              $region44: #{custom-call.2} parent=38 // loop_footer
                %s120 = sadd.s32 1, %s116
              $region45: #{custom-call.2} parent=38 // loop_footer_branch
                %115 = sbr.rel target = $region41
              $region46: #{custom-call.2} parent=38 // loop_exit
                _
            $region39: #{custom-call.2} parent=23 // pred_fallthru
              _
          $region24: #{custom-call.2} parent=19 // pred_fallthru
            _
          // Predicated region
          $region25: #{custom-call.2} parent=19 // pred_check
            _
          $region26: #{custom-call.2} parent=19 // pred_check_branch
            %98 = sbr.rel (0) target = $region28
          $region27: #{custom-call.2} parent=19 // pred_region
            %s100 = ssub.s32 16, 1
            loop: start=0, step=1, limit=1
            $region29: #{custom-call.2} parent=27 // loop_pre_header
              _
            $region30: #{custom-call.2} parent=27 // loop_header
              %s102 = sphi 0, %s106
              %p103 = scmp.ge.s32.totalorder %s102, 1
              %s107 = sphi %s92, %s92
              %s108 = sphi %s90, %s90
            $region31: #{custom-call.2} parent=27 // loop_header_branch
              %105 = sbr.rel (%p103) target = $region35
            $region32: #{custom-call.2} parent=27 // loop_body
              %v109 = vld [vmem:[%s107] sm:%s100]
              %110 = vst [vmem:[%s108] sm:%s100] %v109
            $region33: #{custom-call.2} parent=27 // loop_footer
              %s106 = sadd.s32 1, %s102
            $region34: #{custom-call.2} parent=27 // loop_footer_branch
              %101 = sbr.rel target = $region30
            $region35: #{custom-call.2} parent=27 // loop_exit
              _
          $region28: #{custom-call.2} parent=19 // pred_fallthru
            _
        $region20: #{custom-call.2} parent=15 // pred_fallthru
          _
        %125 = vnop
        %s126 = sand.u32 %s12, 1
        %s127 = sand.u32 %s12, 1
        %s128 = smul.addr %s127, 4
        %s129 = scalar_lea.vmem [#allocation3], %s128
        %s130 = smul.addr %s12, 4
        %s131 = scalar_lea.vmem %s1, %s130
        // Predicated region
        $region47: #{custom-call.2} parent=15 // pred_check
          _
        $region48: #{custom-call.2} parent=15 // pred_check_branch
          %133 = sbr.rel (0) target = $region50
        $region49: #{custom-call.2} parent=15 // pred_region
          // Predicated region
          $region51: #{custom-call.2} parent=49 // pred_check
            _
          $region52: #{custom-call.2} parent=49 // pred_check_branch
            %135 = sbr.rel target = $region54
          $region53: #{custom-call.2} parent=49 // pred_region
            // Predicated region
            $region66: #{custom-call.2} parent=53 // pred_check
              _
            $region67: #{custom-call.2} parent=53 // pred_check_branch
              %151 = sbr.rel (0) target = $region69
            $region68: #{custom-call.2} parent=53 // pred_region
              %s153 = ssub.s32 16, 1
              loop: start=0, step=1, limit=1
              $region70: #{custom-call.2} parent=68 // loop_pre_header
                _
              $region71: #{custom-call.2} parent=68 // loop_header
                %s155 = sphi 0, %s159
                %p156 = scmp.ge.s32.totalorder %s155, 1
                %s160 = sphi %s131, %s131
                %s161 = sphi %s129, %s129
              $region72: #{custom-call.2} parent=68 // loop_header_branch
                %158 = sbr.rel (%p156) target = $region76
              $region73: #{custom-call.2} parent=68 // loop_body
                %v162 = vld [vmem:[%s160] sm:%s153]
                %163 = vst [vmem:[%s161] sm:%s153] %v162
              $region74: #{custom-call.2} parent=68 // loop_footer
                %s159 = sadd.s32 1, %s155
              $region75: #{custom-call.2} parent=68 // loop_footer_branch
                %154 = sbr.rel target = $region71
              $region76: #{custom-call.2} parent=68 // loop_exit
                _
            $region69: #{custom-call.2} parent=53 // pred_fallthru
              _
          $region54: #{custom-call.2} parent=49 // pred_fallthru
            _
          // Predicated region
          $region55: #{custom-call.2} parent=49 // pred_check
            _
          $region56: #{custom-call.2} parent=49 // pred_check_branch
            %137 = sbr.rel (0) target = $region58
          $region57: #{custom-call.2} parent=49 // pred_region
            %s139 = ssub.s32 16, 1
            loop: start=0, step=1, limit=1
            $region59: #{custom-call.2} parent=57 // loop_pre_header
              _
            $region60: #{custom-call.2} parent=57 // loop_header
              %s141 = sphi 0, %s145
              %p142 = scmp.ge.s32.totalorder %s141, 1
              %s146 = sphi %s131, %s131
              %s147 = sphi %s129, %s129
            $region61: #{custom-call.2} parent=57 // loop_header_branch
              %144 = sbr.rel (%p142) target = $region65
            $region62: #{custom-call.2} parent=57 // loop_body
              %v148 = vld [vmem:[%s146] sm:%s139]
              %149 = vst [vmem:[%s147] sm:%s139] %v148
            $region63: #{custom-call.2} parent=57 // loop_footer
              %s145 = sadd.s32 1, %s141
            $region64: #{custom-call.2} parent=57 // loop_footer_branch
              %140 = sbr.rel target = $region60
            $region65: #{custom-call.2} parent=57 // loop_exit
              _
          $region58: #{custom-call.2} parent=49 // pred_fallthru
            _
        $region50: #{custom-call.2} parent=15 // pred_fallthru
          _
        %164 = vnop
        %s165 = sand.u32 %s12, 1
        %s166 = sand.u32 %s12, 1
        %s167 = smul.addr %s166, 4
        %s168 = scalar_lea.vmem [#allocation5], %s167
        %s169 = smul.addr %s12, 4
        %s170 = scalar_lea.vmem %s2, %s169
        // Predicated region
        $region77: #{custom-call.2} parent=15 // pred_check
          _
        $region78: #{custom-call.2} parent=15 // pred_check_branch
          %172 = sbr.rel (0) target = $region80
        $region79: #{custom-call.2} parent=15 // pred_region
          // Predicated region
          $region81: #{custom-call.2} parent=79 // pred_check
            _
          $region82: #{custom-call.2} parent=79 // pred_check_branch
            %174 = sbr.rel target = $region84
          $region83: #{custom-call.2} parent=79 // pred_region
            // Predicated region
            $region96: #{custom-call.2} parent=83 // pred_check
              _
            $region97: #{custom-call.2} parent=83 // pred_check_branch
              %190 = sbr.rel (0) target = $region99
            $region98: #{custom-call.2} parent=83 // pred_region
              %s192 = ssub.s32 16, 1
              loop: start=0, step=1, limit=1
              $region100: #{custom-call.2} parent=98 // loop_pre_header
                _
              $region101: #{custom-call.2} parent=98 // loop_header
                %s194 = sphi 0, %s198
                %p195 = scmp.ge.s32.totalorder %s194, 1
                %s199 = sphi %s170, %s170
                %s200 = sphi %s168, %s168
              $region102: #{custom-call.2} parent=98 // loop_header_branch
                %197 = sbr.rel (%p195) target = $region106
              $region103: #{custom-call.2} parent=98 // loop_body
                %v201 = vld [vmem:[%s199] sm:%s192]
                %202 = vst [vmem:[%s200] sm:%s192] %v201
              $region104: #{custom-call.2} parent=98 // loop_footer
                %s198 = sadd.s32 1, %s194
              $region105: #{custom-call.2} parent=98 // loop_footer_branch
                %193 = sbr.rel target = $region101
              $region106: #{custom-call.2} parent=98 // loop_exit
                _
            $region99: #{custom-call.2} parent=83 // pred_fallthru
              _
          $region84: #{custom-call.2} parent=79 // pred_fallthru
            _
          // Predicated region
          $region85: #{custom-call.2} parent=79 // pred_check
            _
          $region86: #{custom-call.2} parent=79 // pred_check_branch
            %176 = sbr.rel (0) target = $region88
          $region87: #{custom-call.2} parent=79 // pred_region
            %s178 = ssub.s32 16, 1
            loop: start=0, step=1, limit=1
            $region89: #{custom-call.2} parent=87 // loop_pre_header
              _
            $region90: #{custom-call.2} parent=87 // loop_header
              %s180 = sphi 0, %s184
              %p181 = scmp.ge.s32.totalorder %s180, 1
              %s185 = sphi %s170, %s170
              %s186 = sphi %s168, %s168
            $region91: #{custom-call.2} parent=87 // loop_header_branch
              %183 = sbr.rel (%p181) target = $region95
            $region92: #{custom-call.2} parent=87 // loop_body
              %v187 = vld [vmem:[%s185] sm:%s178]
              %188 = vst [vmem:[%s186] sm:%s178] %v187
            $region93: #{custom-call.2} parent=87 // loop_footer
              %s184 = sadd.s32 1, %s180
            $region94: #{custom-call.2} parent=87 // loop_footer_branch
              %179 = sbr.rel target = $region90
            $region95: #{custom-call.2} parent=87 // loop_exit
              _
          $region88: #{custom-call.2} parent=79 // pred_fallthru
            _
        $region80: #{custom-call.2} parent=15 // pred_fallthru
          _
        %203 = vnop
        %s204 = sand.u32 %s12, 1
        %s205 = sand.u32 %s12, 1
        %s206 = smul.addr %s205, 4
        %s207 = scalar_lea.vmem [#allocation7], %s206
        %s208 = smul.addr %s12, 4
        %s209 = scalar_lea.vmem %s3, %s208
        // Predicated region
        $region107: #{custom-call.2} parent=15 // pred_check
          _
        $region108: #{custom-call.2} parent=15 // pred_check_branch
          %211 = sbr.rel (0) target = $region110
        $region109: #{custom-call.2} parent=15 // pred_region
          // Predicated region
          $region111: #{custom-call.2} parent=109 // pred_check
            _
          $region112: #{custom-call.2} parent=109 // pred_check_branch
            %213 = sbr.rel target = $region114
          $region113: #{custom-call.2} parent=109 // pred_region
            // Predicated region
            $region126: #{custom-call.2} parent=113 // pred_check
              _
            $region127: #{custom-call.2} parent=113 // pred_check_branch
              %229 = sbr.rel (0) target = $region129
            $region128: #{custom-call.2} parent=113 // pred_region
              %s231 = ssub.s32 16, 1
              loop: start=0, step=1, limit=1
              $region130: #{custom-call.2} parent=128 // loop_pre_header
                _
              $region131: #{custom-call.2} parent=128 // loop_header
                %s233 = sphi 0, %s237
                %p234 = scmp.ge.s32.totalorder %s233, 1
                %s238 = sphi %s209, %s209
                %s239 = sphi %s207, %s207
              $region132: #{custom-call.2} parent=128 // loop_header_branch
                %236 = sbr.rel (%p234) target = $region136
              $region133: #{custom-call.2} parent=128 // loop_body
                %v240 = vld [vmem:[%s238] sm:%s231]
                %241 = vst [vmem:[%s239] sm:%s231] %v240
              $region134: #{custom-call.2} parent=128 // loop_footer
                %s237 = sadd.s32 1, %s233
              $region135: #{custom-call.2} parent=128 // loop_footer_branch
                %232 = sbr.rel target = $region131
              $region136: #{custom-call.2} parent=128 // loop_exit
                _
            $region129: #{custom-call.2} parent=113 // pred_fallthru
              _
          $region114: #{custom-call.2} parent=109 // pred_fallthru
            _
          // Predicated region
          $region115: #{custom-call.2} parent=109 // pred_check
            _
          $region116: #{custom-call.2} parent=109 // pred_check_branch
            %215 = sbr.rel (0) target = $region118
          $region117: #{custom-call.2} parent=109 // pred_region
            %s217 = ssub.s32 16, 1
            loop: start=0, step=1, limit=1
            $region119: #{custom-call.2} parent=117 // loop_pre_header
              _
            $region120: #{custom-call.2} parent=117 // loop_header
              %s219 = sphi 0, %s223
              %p220 = scmp.ge.s32.totalorder %s219, 1
              %s224 = sphi %s209, %s209
              %s225 = sphi %s207, %s207
            $region121: #{custom-call.2} parent=117 // loop_header_branch
              %222 = sbr.rel (%p220) target = $region125
            $region122: #{custom-call.2} parent=117 // loop_body
              %v226 = vld [vmem:[%s224] sm:%s217]
              %227 = vst [vmem:[%s225] sm:%s217] %v226
            $region123: #{custom-call.2} parent=117 // loop_footer
              %s223 = sadd.s32 1, %s219
            $region124: #{custom-call.2} parent=117 // loop_footer_branch
              %218 = sbr.rel target = $region120
            $region125: #{custom-call.2} parent=117 // loop_exit
              _
          $region118: #{custom-call.2} parent=109 // pred_fallthru
            _
        $region110: #{custom-call.2} parent=15 // pred_fallthru
          _
        %242 = vnop
      $region16: #{custom-call.2} parent=5 // pred_fallthru
        _
      %p243 = scmp.le.s32.totalorder 1, %s12
      %p244 = scmp.lt.s32.totalorder %s12, 3
      %p245 = pnand %p243, %p244
      %p246 = pneg %p245
      // Predicated region
      $region137: #{custom-call.2} parent=5 // pred_check
        _
      $region138: #{custom-call.2} parent=5 // pred_check_branch
        %248 = sbr.rel (%p245) target = $region140
      $region139: #{custom-call.2} parent=5 // pred_region
        #allocation20 [shape = 'f32[4,4]{1,0}', space=vmem, size = 0x1000, scoped, tag = 'a top-left matrix']
        #allocation21 [shape = 'f32[4,4]{1,0}', space=vmem, size = 0x1000, scoped, tag = 'a top-right matrix']
        #allocation22 [shape = 'f32[4,4]{1,0}', space=vmem, size = 0x1000, scoped, tag = 'a bottom-left matrix']
        #allocation23 [shape = 'f32[4,4]{1,0}', space=vmem, size = 0x1000, scoped, tag = 'a bottom-right matrix']
        %s249 = ssub.s32 %s12, 1
        %s250 = sand.u32 %s17, 1
        %s251 = sand.u32 %s17, 1
        %s252 = smul.addr %s251, 4
        %s253 = scalar_lea.vmem [#allocation1], %s252
        %s254 = sand.u32 %s17, 1
        %s255 = sand.u32 %s17, 1
        %s256 = smul.addr %s255, 4
        %s257 = scalar_lea.vmem [#allocation3], %s256
        %s258 = sand.u32 %s17, 1
        %s259 = sand.u32 %s17, 1
        %s260 = smul.addr %s259, 4
        %s261 = scalar_lea.vmem [#allocation5], %s260
        %s262 = sand.u32 %s17, 1
        %s263 = sand.u32 %s17, 1
        %s264 = smul.addr %s263, 4
        %s265 = scalar_lea.vmem [#allocation7], %s264
        %s266 = sand.u32 %s17, 1
        %s267 = sand.u32 %s17, 1
        %s268 = smul.addr %s267, 4
        %s269 = scalar_lea.vmem [#allocation1], %s268
        %s270 = sand.u32 %s17, 1
        %s271 = sand.u32 %s17, 1
        %s272 = smul.addr %s271, 4
        %s273 = scalar_lea.vmem [#allocation3], %s272
        %s274 = sand.u32 %s17, 1
        %s275 = sand.u32 %s17, 1
        %s276 = smul.addr %s275, 4
        %s277 = scalar_lea.vmem [#allocation5], %s276
        %s278 = sand.u32 %s17, 1
        %s279 = sand.u32 %s17, 1
        %s280 = smul.addr %s279, 4
        %s281 = scalar_lea.vmem [#allocation7], %s280
        %p282 = pneg %p40
        %p283 = pneg %p37
        %s284 = sand.u32 %s27, 1
        %s285 = sand.u32 %s27, 1
        %s286 = smul.addr %s285, 2
        %s287 = scalar_lea.vmem [#allocation9], %s286
        %p288 = pneg %p68
        %p289 = pneg %p65
        %s290 = sand.u32 %s55, 1
        %s291 = sand.u32 %s55, 1
        %s292 = smul.addr %s291, 2
        %s293 = scalar_lea.vmem [#allocation11], %s292
        %s294 = sand.u32 %s17, 1
        %s295 = sand.u32 %s17, 1
        %s296 = smul.addr %s295, 4
        %s297 = scalar_lea.vmem [#allocation13], %s296
        %s298 = sand.u32 %s17, 1
        %s299 = sand.u32 %s17, 1
        %s300 = smul.addr %s299, 4
        %s301 = scalar_lea.vmem [#allocation15], %s300
        %s302 = sand.u32 %s17, 1
        %s303 = sand.u32 %s17, 1
        %s304 = smul.addr %s303, 4
        %s305 = scalar_lea.vmem [#allocation17], %s304
        %s306 = sand.u32 %s17, 1
        %s307 = sand.u32 %s17, 1
        %s308 = smul.addr %s307, 4
        %s309 = scalar_lea.vmem [#allocation19], %s308
        %s311 = ssub.s32 16, 1
        %v312 = vld [vmem:[%s269] sm:%s311]
        %313 = vst [vmem:[#allocation0] sm:%s311] %v312
        %s315 = ssub.s32 16, 1
        %v316 = vld [vmem:[%s273] sm:%s315]
        %317 = vst [vmem:[#allocation2] sm:%s315] %v316
        %s319 = ssub.s32 16, 1
        %v320 = vld [vmem:[%s277] sm:%s319]
        %321 = vst [vmem:[#allocation4] sm:%s319] %v320
        %s323 = ssub.s32 16, 1
        %v324 = vld [vmem:[%s281] sm:%s323]
        %325 = vst [vmem:[#allocation6] sm:%s323] %v324
        %s326 = sshrl.u32 %s17, 3
        %s327 = sshrl.u32 %s17, 3
        %s328 = smov [#allocation20]
        %v329 = vld [vmem:[#allocation0] sm:$0xff]
        %330 = vst [vmem:[%s328] sm:$0xff] %v329
        %s331 = smov [#allocation21]
        %v332 = vld [vmem:[#allocation2] sm:$0xff]
        %333 = vst [vmem:[%s331] sm:$0xff] %v332
        %s334 = smov [#allocation22]
        %v335 = vld [vmem:[#allocation4] sm:$0xff]
        %336 = vst [vmem:[%s334] sm:$0xff] %v335
        %s337 = smov [#allocation23]
        %v338 = vld [vmem:[#allocation6] sm:$0xff]
        %339 = vst [vmem:[%s337] sm:$0xff] %v338
        %340 = vst [vmem:[#allocation12] sm:$0xff] 0.0
        %341 = vst [vmem:[#allocation14] sm:$0xff] 0.0
        %342 = vst [vmem:[#allocation16] sm:$0xff] 0.0
        %343 = vst [vmem:[#allocation18] sm:$0xff] 0.0
        %s344 = smov [#allocation12]
        %v345 = vlaneseq
        %v346 = vand.u32 %v345, 127
        %v347 = vmov %v346
        %v348 = vlaneseq
        %v349 = vshrl.u32 %v348, 7
        %v350 = vmov %v349
        %v351 = vld [vmem:[%s344] sm:$0xf]
        %vm354 = vcmp.eq.s32.totalorder %v350, %v347
        %v355 = vsel %vm354, 1.0, %v351
        %356 = vst [vmem:[%s344] sm:$0xf] %v355
        %s357 = smov [#allocation18]
        %v358 = vlaneseq
        %v359 = vand.u32 %v358, 127
        %v360 = vmov %v359
        %v361 = vlaneseq
        %v362 = vshrl.u32 %v361, 7
        %v363 = vmov %v362
        %v364 = vld [vmem:[%s357] sm:$0xf]
        %vm367 = vcmp.eq.s32.totalorder %v363, %v360
        %v368 = vsel %vm367, 1.0, %v364
        %369 = vst [vmem:[%s357] sm:$0xf] %v368
        // While loop
        $region141: #{custom-call.2} parent=139 // loop_pre_header
          _
        $region142: #{custom-call.2} parent=139 // loop_header
          %s371 = sphi 0, %s953
          %v372 = vlaneseq
          %v373 = vand.u32 %v372, 127
          %v374 = vmov %v373
          %v375 = vlaneseq
          %v376 = vshrl.u32 %v375, 7
          %v377 = vmov %v376
          %s378 = smov [#allocation20]
          %v379 = vlaneseq
          %v380 = vand.u32 %v379, 127
          %vm381 = vcmp.ge.s32.totalorder %v380, 0
          %vm382 = vcmp.lt.s32.totalorder %v380, 4
          %vm383 = vmand %vm381, %vm382
          %v384 = vld [vmem:[%s378] sm:$0xf]
          %v385 = vsel %vm383, %v384, 0.0
          %v386 = vmul.f32 %v385, %v385
          %vm389 = vcmp.eq.s32.totalorder %v377, %v374
          %v390 = vsel %vm389, 0.0, %v386
          %v391 = vlaneseq
          %v392 = vand.u32 %v391, 127
          %v393 = vmov %v392
          %v394 = vlaneseq
          %v395 = vshrl.u32 %v394, 7
          %v396 = vmov %v395
          %s397 = smov [#allocation21]
          %v398 = vlaneseq
          %v399 = vand.u32 %v398, 127
          %vm400 = vcmp.ge.s32.totalorder %v399, 0
          %vm401 = vcmp.lt.s32.totalorder %v399, 4
          %vm402 = vmand %vm400, %vm401
          %v403 = vld [vmem:[%s397] sm:$0xf]
          %v404 = vsel %vm402, %v403, 0.0
          %v405 = vmul.f32 %v404, %v404
          %v406 = vadd.f32 %v390, %v405
          %v407 = vadd.f32 %v386, %v405
          %v408 = vlaneseq
          %v409 = vand.u32 %v408, 127
          %v410 = vmov %v409
          %v411 = vlaneseq
          %v412 = vshrl.u32 %v411, 7
          %v413 = vmov %v412
          %s414 = smov [#allocation22]
          %v415 = vlaneseq
          %v416 = vand.u32 %v415, 127
          %vm417 = vcmp.ge.s32.totalorder %v416, 0
          %vm418 = vcmp.lt.s32.totalorder %v416, 4
          %vm419 = vmand %vm417, %vm418
          %v420 = vld [vmem:[%s414] sm:$0xf]
          %v421 = vsel %vm419, %v420, 0.0
          %v422 = vmul.f32 %v421, %v421
          %v423 = vadd.f32 %v406, %v422
          %v424 = vadd.f32 %v407, %v422
          %v425 = vlaneseq
          %v426 = vand.u32 %v425, 127
          %v427 = vmov %v426
          %v428 = vlaneseq
          %v429 = vshrl.u32 %v428, 7
          %v430 = vmov %v429
          %s431 = smov [#allocation23]
          %v432 = vlaneseq
          %v433 = vand.u32 %v432, 127
          %vm434 = vcmp.ge.s32.totalorder %v433, 0
          %vm435 = vcmp.lt.s32.totalorder %v433, 4
          %vm436 = vmand %vm434, %vm435
          %v437 = vld [vmem:[%s431] sm:$0xf]
          %v438 = vsel %vm436, %v437, 0.0
          %v439 = vmul.f32 %v438, %v438
          %vm442 = vcmp.eq.s32.totalorder %v430, %v427
          %v443 = vsel %vm442, 0.0, %v439
          %v444 = vadd.f32 %v423, %v443
          %v445 = vadd.f32 %v424, %v439
          %446 = vadd.xlane.f32.xlu0 %v445
          %v447 = vpop.xlane.xlu0 %446
          %v448 = vrot.slane %v447, 4
          %v449 = vadd.f32 %v447, %v448
          %v450 = vrot.slane %v449, 2
          %v451 = vadd.f32 %v449, %v450
          %v452 = vrot.slane %v451, 1
          %v453 = vadd.f32 %v451, %v452
          %454 = vadd.xlane.f32.xlu0 %v444
          %v455 = vpop.xlane.xlu0 %454
          %v456 = vrot.slane %v455, 4
          %v457 = vadd.f32 %v455, %v456
          %v458 = vrot.slane %v457, 2
          %v459 = vadd.f32 %v457, %v458
          %v460 = vrot.slane %v459, 1
          %v461 = vadd.f32 %v459, %v460
          %s462 = vtos %v461
          %s463 = vtos %v453
          %s464 = smul.f32 1e-10, %s463
          %p465 = scmp.le.f32.partialorder %s462, %s464
          %p466 = scmp.ge.s32.totalorder %s371, 15
          %p467 = por %p465, %p466
        $region143: #{custom-call.2} parent=139 // loop_header_branch
          %955 = sbr.rel (%p467) target = $region147
        $region144: #{custom-call.2} parent=139 // loop_body
          loop: start=0, step=1, limit=7
          $region148: #{custom-call.2} parent=144 // loop_pre_header
            _
          $region149: #{custom-call.2} parent=144 // loop_header
            %s469 = sphi 0, %s473
            %p470 = scmp.ge.s32.totalorder %s469, 7
          $region150: #{custom-call.2} parent=144 // loop_header_branch
            %472 = sbr.rel (%p470) target = $region154
          $region151: #{custom-call.2} parent=144 // loop_body
            #allocation24 [shape = 'f32[1024]{0}', space=vmem, size = 0x1000, scoped, tag = 'a_tl_diag vmem']
            #allocation25 [shape = 'f32[1024]{0}', space=vmem, size = 0x1000, scoped, tag = 'a_tr_diag vmem']
            #allocation26 [shape = 'f32[1024]{0}', space=vmem, size = 0x1000, scoped, tag = 'a_br_diag vmem']
            #allocation27 [shape = 'f32[1024]{0}', space=vmem, size = 0x1000, scoped, tag = 'rt1 vmem']
            #allocation28 [shape = 'f32[1024]{0}', space=vmem, size = 0x1000, scoped, tag = 'rt2 vmem']
            #allocation29 [shape = 'f32[1024]{0}', space=vmem, size = 0x1000, scoped, tag = 'c vmem']
            #allocation30 [shape = 'f32[1024]{0}', space=vmem, size = 0x1000, scoped, tag = 's vmem']
            #allocation31 [shape = 'f32[4096]{0}', space=vmem, size = 0x4000, scoped, tag = 'c broadcast']
            #allocation32 [shape = 'f32[4096]{0}', space=vmem, size = 0x4000, scoped, tag = 's broadcast']
            %s474 = smov [#allocation20]
            %s475 = smov [#allocation24]
            %v476 = vlaneseq
            %v477 = vand.u32 %v476, 127
            %v478 = vmov %v477
            %v479 = vlaneseq
            %v480 = vshrl.u32 %v479, 7
            %v481 = vmov %v480
            %v482 = vld [vmem:[%s474] sm:$0xf]
            %vm485 = vcmp.eq.s32.totalorder %v481, %v478
            %v486 = vsel %vm485, %v482, 0.0
            %v487 = vrot.slane %v486, 4
            %v488 = vadd.f32 %v486, %v487
            %v489 = vrot.slane %v488, 2
            %v490 = vadd.f32 %v488, %v489
            %v491 = vrot.slane %v490, 1
            %v492 = vadd.f32 %v490, %v491
            %493 = vst [vmem:[%s475] sm:$0x1] %v492
            %s494 = smov [#allocation21]
            %s495 = smov [#allocation25]
            %v496 = vlaneseq
            %v497 = vand.u32 %v496, 127
            %v498 = vmov %v497
            %v499 = vlaneseq
            %v500 = vshrl.u32 %v499, 7
            %v501 = vmov %v500
            %v502 = vld [vmem:[%s494] sm:$0xf]
            %vm505 = vcmp.eq.s32.totalorder %v501, %v498
            %v506 = vsel %vm505, %v502, 0.0
            %v507 = vrot.slane %v506, 4
            %v508 = vadd.f32 %v506, %v507
            %v509 = vrot.slane %v508, 2
            %v510 = vadd.f32 %v508, %v509
            %v511 = vrot.slane %v510, 1
            %v512 = vadd.f32 %v510, %v511
            %513 = vst [vmem:[%s495] sm:$0x1] %v512
            %s514 = smov [#allocation23]
            %s515 = smov [#allocation26]
            %v516 = vlaneseq
            %v517 = vand.u32 %v516, 127
            %v518 = vmov %v517
            %v519 = vlaneseq
            %v520 = vshrl.u32 %v519, 7
            %v521 = vmov %v520
            %v522 = vld [vmem:[%s514] sm:$0xf]
            %vm525 = vcmp.eq.s32.totalorder %v521, %v518
            %v526 = vsel %vm525, %v522, 0.0
            %v527 = vrot.slane %v526, 4
            %v528 = vadd.f32 %v526, %v527
            %v529 = vrot.slane %v528, 2
            %v530 = vadd.f32 %v528, %v529
            %v531 = vrot.slane %v530, 1
            %v532 = vadd.f32 %v530, %v531
            %533 = vst [vmem:[%s515] sm:$0x1] %v532
            %s534 = smov [#allocation29]
            %s535 = smov [#allocation30]
            %s536 = smov [#allocation24]
            %v537 = vld [vmem:[%s536] sm:$0xff]
            %s538 = smov [#allocation25]
            %v539 = vld [vmem:[%s538] sm:$0xff]
            %s540 = smov [#allocation26]
            %v541 = vld [vmem:[%s540] sm:$0xff]
            %v542 = vsub.f32 %v541, %v537
            %v543 = vmul.f32 2.0, %v539
            %v544 = vrcp.pop %v543
            %v545 = vmul.f32 %v543, %v544
            %v546 = vsub.f32 1.0, %v545
            %v547 = vmul.f32 %v544, %v546
            %v548 = vadd.f32 %v544, %v547
            %vm549 = vweird.f32 %v543
            %vm550 = vweird.f32 %v544
            %vm551 = vmor %vm549, %vm550
            %v552 = vsel %vm551, %v544, %v548
            %v553 = vand.u32 2147483647, %v543
            %vm554 = vcmp.eq.f32.partialorder %v553, 8.507059e+37
            %v555 = vand.u32 %v543, 2147483648
            %v556 = vor.u32 1.1754944e-38, %v555
            %v557 = vsel %vm554, %v556, %v552
            %v558 = vmul.f32 %v542, %v557
            %vm559 = vcmp.ge.f32.partialorder %v558, 0.0
            %v560 = vmul.f32 %v558, %v558
            %v561 = vadd.f32 1.0, %v560
            %v562 = vrsqrt.pop %v561
            %v563 = vmul.f32 %v562, %v561
            %v564 = vmul.f32 %v563, %v562
            %v565 = vmul.f32 0.5, %v564
            %v566 = vsub.f32 1.5, %v565
            %v567 = vmul.f32 %v562, %v566
            %v568 = vmul.f32 %v561, %v567
            %vm569 = vcmp.eq.f32.partialorder %v561, inf
            %v570 = vsel %vm569, %v561, %v568
            %vm571 = vcmp.eq.f32.partialorder %v561, 0.0
            %v572 = vand.u32 %v561, 2147483648
            %v573 = vsel %vm571, %v572, %v570
            %v574 = vxor.u32 %v573, 2147483648
            %v575 = vsel %vm559, %v573, %v574
            %v576 = vadd.f32 %v558, %v575
            %v577 = vrcp.pop %v576
            %v578 = vmul.f32 %v576, %v577
            %v579 = vsub.f32 1.0, %v578
            %v580 = vmul.f32 %v577, %v579
            %v581 = vadd.f32 %v577, %v580
            %vm582 = vweird.f32 %v576
            %vm583 = vweird.f32 %v577
            %vm584 = vmor %vm582, %vm583
            %v585 = vsel %vm584, %v577, %v581
            %v586 = vand.u32 2147483647, %v576
            %vm587 = vcmp.eq.f32.partialorder %v586, 8.507059e+37
            %v588 = vand.u32 %v576, 2147483648
            %v589 = vor.u32 1.1754944e-38, %v588
            %v590 = vsel %vm587, %v589, %v585
            %v591 = vand.u32 2147483647, %v537
            %v592 = vand.u32 2147483647, %v539
            %v593 = vand.u32 2147483647, %v541
            %v594 = vmin.f32 %v591, %v593
            %v595 = vmul.f32 1.1920929e-08, %v594
            %vm596 = vcmp.le.f32.partialorder %v592, %v595
            %v597 = vsel %vm596, 0.0, %v590
            %v598 = vmul.f32 %v597, %v597
            %v599 = vadd.f32 1.0, %v598
            %v600 = vrsqrt.pop %v599
            %v601 = vmul.f32 %v600, %v599
            %v602 = vmul.f32 %v601, %v600
            %v603 = vmul.f32 0.5, %v602
            %v604 = vsub.f32 1.5, %v603
            %v605 = vmul.f32 %v600, %v604
            %vm606 = vweird.f32 %v599
            %vm607 = vweird.f32 %v600
            %vm608 = vmor %vm606, %vm607
            %v609 = vsel %vm608, %v600, %v605
            %v610 = vmul.f32 %v597, %v609
            %v611 = vmul.f32 %v597, %v539
            %v612 = vsub.f32 %v537, %v611
            %v613 = vmul.f32 %v597, %v539
            %v614 = vadd.f32 %v541, %v613
            %s615 = smov [#allocation27]
            %616 = vst [vmem:[%s615] sm:$0xff] %v612
            %s617 = smov [#allocation28]
            %618 = vst [vmem:[%s617] sm:$0xff] %v614
            %s619 = smov %s534
            %620 = vst [vmem:[%s619] sm:$0xff] %v609
            %s621 = smov %s535
            %622 = vst [vmem:[%s621] sm:$0xff] %v610
            %s623 = smov [#allocation29]
            %v624 = vld [vmem:[%s623] ss:$0 sm:$0xff]
            %v625 = vlaneseq
            %v626 = vand.u32 %v625, 127
            %v627 = vmov %v626
            %v628 = vlaneseq
            %v629 = vshrl.u32 %v628, 7
            %v630 = vmov %v629
            %vm632 = vcmp.eq.s32.totalorder %v630, %v627
            %v633 = vsel %vm632, %v624, 0.0
            %634 = vadd.xlane.f32.xlu0 %v633
            %v635 = vpop.xlane.xlu0 %634
            %s636 = smov [#allocation31]
            %637 = vst [vmem:[%s636] sm:$0xff] %v635
            %s638 = smov [#allocation30]
            %v639 = vld [vmem:[%s638] ss:$0 sm:$0xff]
            %v640 = vlaneseq
            %v641 = vand.u32 %v640, 127
            %v642 = vmov %v641
            %v643 = vlaneseq
            %v644 = vshrl.u32 %v643, 7
            %v645 = vmov %v644
            %vm647 = vcmp.eq.s32.totalorder %v645, %v642
            %v648 = vsel %vm647, %v639, 0.0
            %649 = vadd.xlane.f32.xlu0 %v648
            %v650 = vpop.xlane.xlu0 %649
            %s651 = smov [#allocation32]
            %652 = vst [vmem:[%s651] sm:$0xff] %v650
            %s653 = smov [#allocation31]
            %v654 = vld [vmem:[%s653] sm:$0xff]
            %s655 = smov [#allocation32]
            %v656 = vld [vmem:[%s655] sm:$0xff]
            %s657 = smov [#allocation20]
            %s658 = smov [#allocation21]
            %s659 = smov [#allocation22]
            %s660 = smov [#allocation23]
            %v661 = vld [vmem:[%s657] sm:$0xf]
            %v662 = vld [vmem:[%s658] sm:$0xf]
            %v663 = vld [vmem:[%s659] sm:$0xf]
            %v664 = vld [vmem:[%s660] sm:$0xf]
            %v665 = vmul.f32 %v654, %v661
            %v666 = vmul.f32 %v656, %v663
            %v667 = vsub.f32 %v665, %v666
            %v668 = vmul.f32 %v654, %v662
            %v669 = vmul.f32 %v656, %v664
            %v670 = vsub.f32 %v668, %v669
            %v671 = vmul.f32 %v656, %v661
            %v672 = vmul.f32 %v654, %v663
            %v673 = vadd.f32 %v671, %v672
            %v674 = vmul.f32 %v656, %v662
            %v675 = vmul.f32 %v654, %v664
            %v676 = vadd.f32 %v674, %v675
            %677 = vst [vmem:[%s657] sm:$0xf] %v667
            %678 = vst [vmem:[%s658] sm:$0xf] %v670
            %679 = vst [vmem:[%s659] sm:$0xf] %v673
            %680 = vst [vmem:[%s660] sm:$0xf] %v676
            %s681 = smov [#allocation29]
            %v682 = vld [vmem:[%s681] ss:$0 sm:$0xff]
            %s683 = smov [#allocation30]
            %v684 = vld [vmem:[%s683] ss:$0 sm:$0xff]
            %s685 = smov [#allocation20]
            %s686 = smov [#allocation21]
            %s687 = smov [#allocation22]
            %s688 = smov [#allocation23]
            %v689 = vld [vmem:[%s685] sm:$0xf]
            %v690 = vld [vmem:[%s686] sm:$0xf]
            %v691 = vld [vmem:[%s687] sm:$0xf]
            %v692 = vld [vmem:[%s688] sm:$0xf]
            %v693 = vmul.f32 %v682, %v689
            %v694 = vmul.f32 %v684, %v690
            %v695 = vsub.f32 %v693, %v694
            %v696 = vmul.f32 %v684, %v689
            %v697 = vmul.f32 %v682, %v690
            %v698 = vadd.f32 %v696, %v697
            %v699 = vmul.f32 %v682, %v691
            %v700 = vmul.f32 %v684, %v692
            %v701 = vsub.f32 %v699, %v700
            %v702 = vmul.f32 %v684, %v691
            %v703 = vmul.f32 %v682, %v692
            %v704 = vadd.f32 %v702, %v703
            %705 = vst [vmem:[%s685] sm:$0xf] %v695
            %706 = vst [vmem:[%s686] sm:$0xf] %v698
            %707 = vst [vmem:[%s687] sm:$0xf] %v701
            %708 = vst [vmem:[%s688] sm:$0xf] %v704
            %s709 = smov [#allocation20]
            %s710 = smov [#allocation27]
            %v711 = vlaneseq
            %v712 = vand.u32 %v711, 127
            %v713 = vmov %v712
            %v714 = vlaneseq
            %v715 = vshrl.u32 %v714, 7
            %v716 = vmov %v715
            %v717 = vld [vmem:[%s710] ss:$0 sm:$0xff]
            %v718 = vld [vmem:[%s709] sm:$0xf]
            %vm721 = vcmp.eq.s32.totalorder %v716, %v713
            %v722 = vsel %vm721, %v717, %v718
            %723 = vst [vmem:[%s709] sm:$0xf] %v722
            %s724 = smov [#allocation21]
            %v725 = vlaneseq
            %v726 = vand.u32 %v725, 127
            %v727 = vmov %v726
            %v728 = vlaneseq
            %v729 = vshrl.u32 %v728, 7
            %v730 = vmov %v729
            %v731 = vld [vmem:[%s724] sm:$0xf]
            %vm734 = vcmp.eq.s32.totalorder %v730, %v727
            %v735 = vsel %vm734, 0.0, %v731
            %736 = vst [vmem:[%s724] sm:$0xf] %v735
            %s737 = smov [#allocation22]
            %v738 = vlaneseq
            %v739 = vand.u32 %v738, 127
            %v740 = vmov %v739
            %v741 = vlaneseq
            %v742 = vshrl.u32 %v741, 7
            %v743 = vmov %v742
            %v744 = vld [vmem:[%s737] sm:$0xf]
            %vm747 = vcmp.eq.s32.totalorder %v743, %v740
            %v748 = vsel %vm747, 0.0, %v744
            %749 = vst [vmem:[%s737] sm:$0xf] %v748
            %s750 = smov [#allocation23]
            %s751 = smov [#allocation28]
            %v752 = vlaneseq
            %v753 = vand.u32 %v752, 127
            %v754 = vmov %v753
            %v755 = vlaneseq
            %v756 = vshrl.u32 %v755, 7
            %v757 = vmov %v756
            %v758 = vld [vmem:[%s751] ss:$0 sm:$0xff]
            %v759 = vld [vmem:[%s750] sm:$0xf]
            %vm762 = vcmp.eq.s32.totalorder %v757, %v754
            %v763 = vsel %vm762, %v758, %v759
            %764 = vst [vmem:[%s750] sm:$0xf] %v763
            %s765 = smov [#allocation20]
            %s766 = smov [#allocation21]
            %v767 = vld [vmem:[%s766] sm:$0xf]
            %768 = vrot.lane.b32.xlu0 %v767, 1
            %v769 = vpop.permute.xlu0 %768
            %v770 = vld [vmem:[%s765] sm:$0xf]
            %v771 = vld [vmem:[%s765] sm:$0xf]
            %772 = vrot.lane.b32.xlu0 %v771, 1
            %v773 = vpop.permute.xlu0 %772
            %v774 = vlaneseq
            %v775 = vand.u32 %v774, 127
            %vm776 = vcmp.eq.s32.totalorder %v775, 0
            %v777 = vsel %vm776, %v771, %v773
            %v778 = vlaneseq
            %v779 = vand.u32 %v778, 127
            %vm780 = vcmp.eq.s32.totalorder %v779, 1
            %v781 = vsel %vm780, %v769, %v777
            %v782 = vlaneseq
            %v783 = vand.u32 %v782, 127
            %vm784 = vcmp.ge.s32.totalorder %v783, 0
            %vm785 = vcmp.lt.s32.totalorder %v783, 4
            %vm786 = vmand %vm784, %vm785
            %v787 = vsel %vm786, %v781, 0.0
            %v788 = vld [vmem:[%s766] sm:$0xf]
            %789 = vrot.lane.b32.xlu0 %v788, 127
            %v790 = vpop.permute.xlu0 %789
            %v791 = vlaneseq
            %v792 = vand.u32 %v791, 127
            %vm793 = vcmp.eq.s32.totalorder %v792, 3
            %v794 = vsel %vm793, %v770, %v790
            %795 = vst [vmem:[%s765] sm:$0xf] %v787
            %796 = vst [vmem:[%s766] sm:$0xf] %v794
            %s797 = smov [#allocation22]
            %s798 = smov [#allocation23]
            %v799 = vld [vmem:[%s798] sm:$0xf]
            %800 = vrot.lane.b32.xlu0 %v799, 1
            %v801 = vpop.permute.xlu0 %800
            %v802 = vld [vmem:[%s797] sm:$0xf]
            %v803 = vld [vmem:[%s797] sm:$0xf]
            %804 = vrot.lane.b32.xlu0 %v803, 1
            %v805 = vpop.permute.xlu0 %804
            %v806 = vlaneseq
            %v807 = vand.u32 %v806, 127
            %vm808 = vcmp.eq.s32.totalorder %v807, 0
            %v809 = vsel %vm808, %v803, %v805
            %v810 = vlaneseq
            %v811 = vand.u32 %v810, 127
            %vm812 = vcmp.eq.s32.totalorder %v811, 1
            %v813 = vsel %vm812, %v801, %v809
            %v814 = vlaneseq
            %v815 = vand.u32 %v814, 127
            %vm816 = vcmp.ge.s32.totalorder %v815, 0
            %vm817 = vcmp.lt.s32.totalorder %v815, 4
            %vm818 = vmand %vm816, %vm817
            %v819 = vsel %vm818, %v813, 0.0
            %v820 = vld [vmem:[%s798] sm:$0xf]
            %821 = vrot.lane.b32.xlu0 %v820, 127
            %v822 = vpop.permute.xlu0 %821
            %v823 = vlaneseq
            %v824 = vand.u32 %v823, 127
            %vm825 = vcmp.eq.s32.totalorder %v824, 3
            %v826 = vsel %vm825, %v802, %v822
            %827 = vst [vmem:[%s797] sm:$0xf] %v819
            %828 = vst [vmem:[%s798] sm:$0xf] %v826
            %s829 = smov [#allocation20]
            %s830 = smov [#allocation22]
            %v831 = vld [vmem:[%s829] ss:$0 sm:$0xff]
            %s833 = scalar_lea.vmem %s829, 4294967295
            %v834 = vld [vmem:[%s833] sm:$0xe]
            %v835 = vlaneseq
            %v836 = vshrl.u32 %v835, 7
            %vm837 = vcmp.eq.s32.totalorder %v836, 0
            %v838 = vsel %vm837, %v831, %v834
            %s839 = scalar_lea.vmem %s829, 3
            %v840 = vld [vmem:[%s839] ss:$0 sm:$0xff]
            %841 = vst [vmem:[%s829] sm:$0xf] %v838
            %v842 = vld [vmem:[%s830] ss:$0 sm:$0xff]
            %s843 = scalar_lea.vmem %s829, 1
            %844 = vst [vmem:[%s843] sm:$0x1] %v842
            %s845 = scalar_lea.vmem %s830, 1
            %v846 = vld [vmem:[%s845] sm:$0x7]
            %v847 = vlaneseq
            %v848 = vshrl.u32 %v847, 7
            %vm849 = vcmp.eq.s32.totalorder %v848, 3
            %v850 = vsel %vm849, %v840, %v846
            %v851 = vld [vmem:[%s830] ss:$0 sm:$0xff]
            %852 = vst [vmem:[%s830] sm:$0xf] %v850
            %s853 = smov [#allocation21]
            %s854 = smov [#allocation23]
            %v855 = vld [vmem:[%s853] ss:$0 sm:$0xff]
            %s857 = scalar_lea.vmem %s853, 4294967295
            %v858 = vld [vmem:[%s857] sm:$0xe]
            %v859 = vlaneseq
            %v860 = vshrl.u32 %v859, 7
            %vm861 = vcmp.eq.s32.totalorder %v860, 0
            %v862 = vsel %vm861, %v855, %v858
            %s863 = scalar_lea.vmem %s853, 3
            %v864 = vld [vmem:[%s863] ss:$0 sm:$0xff]
            %865 = vst [vmem:[%s853] sm:$0xf] %v862
            %v866 = vld [vmem:[%s854] ss:$0 sm:$0xff]
            %s867 = scalar_lea.vmem %s853, 1
            %868 = vst [vmem:[%s867] sm:$0x1] %v866
            %s869 = scalar_lea.vmem %s854, 1
            %v870 = vld [vmem:[%s869] sm:$0x7]
            %v871 = vlaneseq
            %v872 = vshrl.u32 %v871, 7
            %vm873 = vcmp.eq.s32.totalorder %v872, 3
            %v874 = vsel %vm873, %v864, %v870
            %v875 = vld [vmem:[%s854] ss:$0 sm:$0xff]
            %876 = vst [vmem:[%s854] sm:$0xf] %v874
            %s877 = smov [#allocation31]
            %v878 = vld [vmem:[%s877] sm:$0xff]
            %s879 = smov [#allocation32]
            %v880 = vld [vmem:[%s879] sm:$0xff]
            %s881 = smov [#allocation12]
            %s882 = smov [#allocation14]
            %s883 = smov [#allocation16]
            %s884 = smov [#allocation18]
            %v885 = vld [vmem:[%s881] sm:$0xf]
            %v886 = vld [vmem:[%s882] sm:$0xf]
            %v887 = vld [vmem:[%s883] sm:$0xf]
            %v888 = vld [vmem:[%s884] sm:$0xf]
            %v889 = vmul.f32 %v878, %v885
            %v890 = vmul.f32 %v880, %v887
            %v891 = vsub.f32 %v889, %v890
            %v892 = vmul.f32 %v878, %v886
            %v893 = vmul.f32 %v880, %v888
            %v894 = vsub.f32 %v892, %v893
            %v895 = vmul.f32 %v880, %v885
            %v896 = vmul.f32 %v878, %v887
            %v897 = vadd.f32 %v895, %v896
            %v898 = vmul.f32 %v880, %v886
            %v899 = vmul.f32 %v878, %v888
            %v900 = vadd.f32 %v898, %v899
            %901 = vst [vmem:[%s881] sm:$0xf] %v891
            %902 = vst [vmem:[%s882] sm:$0xf] %v894
            %903 = vst [vmem:[%s883] sm:$0xf] %v897
            %904 = vst [vmem:[%s884] sm:$0xf] %v900
            %s905 = smov [#allocation12]
            %s906 = smov [#allocation16]
            %v907 = vld [vmem:[%s905] ss:$0 sm:$0xff]
            %s909 = scalar_lea.vmem %s905, 4294967295
            %v910 = vld [vmem:[%s909] sm:$0xe]
            %v911 = vlaneseq
            %v912 = vshrl.u32 %v911, 7
            %vm913 = vcmp.eq.s32.totalorder %v912, 0
            %v914 = vsel %vm913, %v907, %v910
            %s915 = scalar_lea.vmem %s905, 3
            %v916 = vld [vmem:[%s915] ss:$0 sm:$0xff]
            %917 = vst [vmem:[%s905] sm:$0xf] %v914
            %v918 = vld [vmem:[%s906] ss:$0 sm:$0xff]
            %s919 = scalar_lea.vmem %s905, 1
            %920 = vst [vmem:[%s919] sm:$0x1] %v918
            %s921 = scalar_lea.vmem %s906, 1
            %v922 = vld [vmem:[%s921] sm:$0x7]
            %v923 = vlaneseq
            %v924 = vshrl.u32 %v923, 7
            %vm925 = vcmp.eq.s32.totalorder %v924, 3
            %v926 = vsel %vm925, %v916, %v922
            %v927 = vld [vmem:[%s906] ss:$0 sm:$0xff]
            %928 = vst [vmem:[%s906] sm:$0xf] %v926
            %s929 = smov [#allocation14]
            %s930 = smov [#allocation18]
            %v931 = vld [vmem:[%s929] ss:$0 sm:$0xff]
            %s933 = scalar_lea.vmem %s929, 4294967295
            %v934 = vld [vmem:[%s933] sm:$0xe]
            %v935 = vlaneseq
            %v936 = vshrl.u32 %v935, 7
            %vm937 = vcmp.eq.s32.totalorder %v936, 0
            %v938 = vsel %vm937, %v931, %v934
            %s939 = scalar_lea.vmem %s929, 3
            %v940 = vld [vmem:[%s939] ss:$0 sm:$0xff]
            %941 = vst [vmem:[%s929] sm:$0xf] %v938
            %v942 = vld [vmem:[%s930] ss:$0 sm:$0xff]
            %s943 = scalar_lea.vmem %s929, 1
            %944 = vst [vmem:[%s943] sm:$0x1] %v942
            %s945 = scalar_lea.vmem %s930, 1
            %v946 = vld [vmem:[%s945] sm:$0x7]
            %v947 = vlaneseq
            %v948 = vshrl.u32 %v947, 7
            %vm949 = vcmp.eq.s32.totalorder %v948, 3
            %v950 = vsel %vm949, %v940, %v946
            %v951 = vld [vmem:[%s930] ss:$0 sm:$0xff]
            %952 = vst [vmem:[%s930] sm:$0xf] %v950
          $region152: #{custom-call.2} parent=144 // loop_footer
            %s473 = sadd.s32 1, %s469
          $region153: #{custom-call.2} parent=144 // loop_footer_branch
            %468 = sbr.rel target = $region149
          $region154: #{custom-call.2} parent=144 // loop_exit
            _
          %s953 = sadd.s32 %s371, 1
        $region145: #{custom-call.2} parent=139 // loop_footer
          _
        $region146: #{custom-call.2} parent=139 // loop_footer_branch
          %370 = sbr.rel target = $region142
        $region147: #{custom-call.2} parent=139 // loop_exit
          _
        %s956 = sand.u32 %s17, 7
        %s957 = scalar_lea.vmem [#allocation8], %s956
        %s958 = sand.u32 %s17, 7
        %s959 = scalar_lea.vmem [#allocation10], %s958
        %s960 = smov [#allocation20]
        %s961 = smov %s957
        %v962 = vlaneseq
        %v963 = vand.u32 %v962, 127
        %v964 = vmov %v963
        %v965 = vlaneseq
        %v966 = vshrl.u32 %v965, 7
        %v967 = vmov %v966
        %v968 = vld [vmem:[%s960] sm:$0xf]
        %vm971 = vcmp.eq.s32.totalorder %v967, %v964
        %v972 = vsel %vm971, %v968, 0.0
        %v973 = vrot.slane %v972, 4
        %v974 = vadd.f32 %v972, %v973
        %v975 = vrot.slane %v974, 2
        %v976 = vadd.f32 %v974, %v975
        %v977 = vrot.slane %v976, 1
        %v978 = vadd.f32 %v976, %v977
        %979 = vst [vmem:[%s961] sm:$0x1] %v978
        %s980 = smov [#allocation23]
        %s981 = smov %s959
        %v982 = vlaneseq
        %v983 = vand.u32 %v982, 127
        %v984 = vmov %v983
        %v985 = vlaneseq
        %v986 = vshrl.u32 %v985, 7
        %v987 = vmov %v986
        %v988 = vld [vmem:[%s980] sm:$0xf]
        %vm991 = vcmp.eq.s32.totalorder %v987, %v984
        %v992 = vsel %vm991, %v988, 0.0
        %v993 = vrot.slane %v992, 4
        %v994 = vadd.f32 %v992, %v993
        %v995 = vrot.slane %v994, 2
        %v996 = vadd.f32 %v994, %v995
        %v997 = vrot.slane %v996, 1
        %v998 = vadd.f32 %v996, %v997
        %999 = vst [vmem:[%s981] sm:$0x1] %v998
        %s1001 = ssub.s32 4, 1
        %v1002 = vld [vmem:[#allocation8] sm:%s1001]
        %s1004 = ssub.s32 4, 1
        %1005 = vst [vmem:[%s287] sm:%s1004] %v1002
        %s1007 = ssub.s32 4, 1
        %v1008 = vld [vmem:[#allocation10] sm:%s1007]
        %s1010 = ssub.s32 4, 1
        %1011 = vst [vmem:[%s293] sm:%s1010] %v1008
        %s1013 = ssub.s32 16, 1
        %v1014 = vld [vmem:[#allocation12] sm:%s1013]
        %s1016 = ssub.s32 16, 1
        %1017 = vst [vmem:[%s297] sm:%s1016] %v1014
        %s1019 = ssub.s32 16, 1
        %v1020 = vld [vmem:[#allocation14] sm:%s1019]
        %s1022 = ssub.s32 16, 1
        %1023 = vst [vmem:[%s301] sm:%s1022] %v1020
        %s1025 = ssub.s32 16, 1
        %v1026 = vld [vmem:[#allocation16] sm:%s1025]
        %s1028 = ssub.s32 16, 1
        %1029 = vst [vmem:[%s305] sm:%s1028] %v1026
        %s1031 = ssub.s32 16, 1
        %v1032 = vld [vmem:[#allocation18] sm:%s1031]
        %s1034 = ssub.s32 16, 1
        %1035 = vst [vmem:[%s309] sm:%s1034] %v1032
        %s1036 = sand.u32 %s27, 1
        %s1037 = sand.u32 %s27, 1
        %s1038 = smul.addr %s1037, 2
        %s1039 = scalar_lea.vmem [#allocation9], %s1038
        %s1040 = sand.u32 %s55, 1
        %s1041 = sand.u32 %s55, 1
        %s1042 = smul.addr %s1041, 2
        %s1043 = scalar_lea.vmem [#allocation11], %s1042
        %s1044 = sand.u32 %s17, 1
        %s1045 = sand.u32 %s17, 1
        %s1046 = smul.addr %s1045, 4
        %s1047 = scalar_lea.vmem [#allocation13], %s1046
        %s1048 = sand.u32 %s17, 1
        %s1049 = sand.u32 %s17, 1
        %s1050 = smul.addr %s1049, 4
        %s1051 = scalar_lea.vmem [#allocation15], %s1050
        %s1052 = sand.u32 %s17, 1
        %s1053 = sand.u32 %s17, 1
        %s1054 = smul.addr %s1053, 4
        %s1055 = scalar_lea.vmem [#allocation17], %s1054
        %s1056 = sand.u32 %s17, 1
        %s1057 = sand.u32 %s17, 1
        %s1058 = smul.addr %s1057, 4
        %s1059 = scalar_lea.vmem [#allocation19], %s1058
        // Predicated region
        $region155: #{custom-call.2} parent=139 // pred_check
          %p1060 = pneg %p37
        $region156: #{custom-call.2} parent=139 // pred_check_branch
          %1062 = sbr.rel (%p1060) target = $region158
        $region157: #{custom-call.2} parent=139 // pred_region
          %s1063 = sshrl.u32 %s17, 3
          %s1064 = smul.addr %s1063, 2
          %s1065 = scalar_lea.vmem %s4, %s1064
          // Predicated region
          $region159: #{custom-call.2} parent=157 // pred_check
            _
          $region160: #{custom-call.2} parent=157 // pred_check_branch
            %1067 = sbr.rel (0) target = $region162
          $region161: #{custom-call.2} parent=157 // pred_region
            // Predicated region
            $region163: #{custom-call.2} parent=161 // pred_check
              _
            $region164: #{custom-call.2} parent=161 // pred_check_branch
              %1069 = sbr.rel target = $region166
            $region165: #{custom-call.2} parent=161 // pred_region
              // Predicated region
              $region178: #{custom-call.2} parent=165 // pred_check
                _
              $region179: #{custom-call.2} parent=165 // pred_check_branch
                %1085 = sbr.rel (0) target = $region181
              $region180: #{custom-call.2} parent=165 // pred_region
                %s1087 = ssub.s32 4, 1
                loop: start=0, step=1, limit=1
                $region182: #{custom-call.2} parent=180 // loop_pre_header
                  _
                $region183: #{custom-call.2} parent=180 // loop_header
                  %s1089 = sphi 0, %s1093
                  %p1090 = scmp.ge.s32.totalorder %s1089, 1
                  %s1094 = sphi %s1039, %s1039
                  %s1095 = sphi %s1065, %s1065
                $region184: #{custom-call.2} parent=180 // loop_header_branch
                  %1092 = sbr.rel (%p1090) target = $region188
                $region185: #{custom-call.2} parent=180 // loop_body
                  %v1096 = vld [vmem:[%s1094] sm:%s1087]
                  %1097 = vst [vmem:[%s1095] sm:%s1087] %v1096
                $region186: #{custom-call.2} parent=180 // loop_footer
                  %s1093 = sadd.s32 1, %s1089
                $region187: #{custom-call.2} parent=180 // loop_footer_branch
                  %1088 = sbr.rel target = $region183
                $region188: #{custom-call.2} parent=180 // loop_exit
                  _
              $region181: #{custom-call.2} parent=165 // pred_fallthru
                _
            $region166: #{custom-call.2} parent=161 // pred_fallthru
              _
            // Predicated region
            $region167: #{custom-call.2} parent=161 // pred_check
              _
            $region168: #{custom-call.2} parent=161 // pred_check_branch
              %1071 = sbr.rel (0) target = $region170
            $region169: #{custom-call.2} parent=161 // pred_region
              %s1073 = ssub.s32 4, 1
              loop: start=0, step=1, limit=1
              $region171: #{custom-call.2} parent=169 // loop_pre_header
                _
              $region172: #{custom-call.2} parent=169 // loop_header
                %s1075 = sphi 0, %s1079
                %p1076 = scmp.ge.s32.totalorder %s1075, 1
                %s1080 = sphi %s1039, %s1039
                %s1081 = sphi %s1065, %s1065
              $region173: #{custom-call.2} parent=169 // loop_header_branch
                %1078 = sbr.rel (%p1076) target = $region177
              $region174: #{custom-call.2} parent=169 // loop_body
                %v1082 = vld [vmem:[%s1080] sm:%s1073]
                %1083 = vst [vmem:[%s1081] sm:%s1073] %v1082
              $region175: #{custom-call.2} parent=169 // loop_footer
                %s1079 = sadd.s32 1, %s1075
              $region176: #{custom-call.2} parent=169 // loop_footer_branch
                %1074 = sbr.rel target = $region172
              $region177: #{custom-call.2} parent=169 // loop_exit
                _
            $region170: #{custom-call.2} parent=161 // pred_fallthru
              _
          $region162: #{custom-call.2} parent=157 // pred_fallthru
            _
          %1098 = vnop
        $region158: #{custom-call.2} parent=139 // pred_fallthru
          _
        // Predicated region
        $region189: #{custom-call.2} parent=139 // pred_check
          %p1099 = pneg %p65
        $region190: #{custom-call.2} parent=139 // pred_check_branch
          %1101 = sbr.rel (%p1099) target = $region192
        $region191: #{custom-call.2} parent=139 // pred_region
          %s1102 = sshrl.u32 %s17, 3
          %s1103 = smul.addr %s1102, 2
          %s1104 = scalar_lea.vmem %s5, %s1103
          // Predicated region
          $region193: #{custom-call.2} parent=191 // pred_check
            _
          $region194: #{custom-call.2} parent=191 // pred_check_branch
            %1106 = sbr.rel (0) target = $region196
          $region195: #{custom-call.2} parent=191 // pred_region
            // Predicated region
            $region197: #{custom-call.2} parent=195 // pred_check
              _
            $region198: #{custom-call.2} parent=195 // pred_check_branch
              %1108 = sbr.rel target = $region200
            $region199: #{custom-call.2} parent=195 // pred_region
              // Predicated region
              $region212: #{custom-call.2} parent=199 // pred_check
                _
              $region213: #{custom-call.2} parent=199 // pred_check_branch
                %1124 = sbr.rel (0) target = $region215
              $region214: #{custom-call.2} parent=199 // pred_region
                %s1126 = ssub.s32 4, 1
                loop: start=0, step=1, limit=1
                $region216: #{custom-call.2} parent=214 // loop_pre_header
                  _
                $region217: #{custom-call.2} parent=214 // loop_header
                  %s1128 = sphi 0, %s1132
                  %p1129 = scmp.ge.s32.totalorder %s1128, 1
                  %s1133 = sphi %s1043, %s1043
                  %s1134 = sphi %s1104, %s1104
                $region218: #{custom-call.2} parent=214 // loop_header_branch
                  %1131 = sbr.rel (%p1129) target = $region222
                $region219: #{custom-call.2} parent=214 // loop_body
                  %v1135 = vld [vmem:[%s1133] sm:%s1126]
                  %1136 = vst [vmem:[%s1134] sm:%s1126] %v1135
                $region220: #{custom-call.2} parent=214 // loop_footer
                  %s1132 = sadd.s32 1, %s1128
                $region221: #{custom-call.2} parent=214 // loop_footer_branch
                  %1127 = sbr.rel target = $region217
                $region222: #{custom-call.2} parent=214 // loop_exit
                  _
              $region215: #{custom-call.2} parent=199 // pred_fallthru
                _
            $region200: #{custom-call.2} parent=195 // pred_fallthru
              _
            // Predicated region
            $region201: #{custom-call.2} parent=195 // pred_check
              _
            $region202: #{custom-call.2} parent=195 // pred_check_branch
              %1110 = sbr.rel (0) target = $region204
            $region203: #{custom-call.2} parent=195 // pred_region
              %s1112 = ssub.s32 4, 1
              loop: start=0, step=1, limit=1
              $region205: #{custom-call.2} parent=203 // loop_pre_header
                _
              $region206: #{custom-call.2} parent=203 // loop_header
                %s1114 = sphi 0, %s1118
                %p1115 = scmp.ge.s32.totalorder %s1114, 1
                %s1119 = sphi %s1043, %s1043
                %s1120 = sphi %s1104, %s1104
              $region207: #{custom-call.2} parent=203 // loop_header_branch
                %1117 = sbr.rel (%p1115) target = $region211
              $region208: #{custom-call.2} parent=203 // loop_body
                %v1121 = vld [vmem:[%s1119] sm:%s1112]
                %1122 = vst [vmem:[%s1120] sm:%s1112] %v1121
              $region209: #{custom-call.2} parent=203 // loop_footer
                %s1118 = sadd.s32 1, %s1114
              $region210: #{custom-call.2} parent=203 // loop_footer_branch
                %1113 = sbr.rel target = $region206
              $region211: #{custom-call.2} parent=203 // loop_exit
                _
            $region204: #{custom-call.2} parent=195 // pred_fallthru
              _
          $region196: #{custom-call.2} parent=191 // pred_fallthru
            _
          %1137 = vnop
        $region192: #{custom-call.2} parent=139 // pred_fallthru
          _
        %s1138 = smul.addr %s17, 4
        %s1139 = scalar_lea.vmem %s6, %s1138
        // Predicated region
        $region223: #{custom-call.2} parent=139 // pred_check
          _
        $region224: #{custom-call.2} parent=139 // pred_check_branch
          %1141 = sbr.rel (0) target = $region226
        $region225: #{custom-call.2} parent=139 // pred_region
          // Predicated region
          $region227: #{custom-call.2} parent=225 // pred_check
            _
          $region228: #{custom-call.2} parent=225 // pred_check_branch
            %1143 = sbr.rel target = $region230
          $region229: #{custom-call.2} parent=225 // pred_region
            // Predicated region
            $region242: #{custom-call.2} parent=229 // pred_check
              _
            $region243: #{custom-call.2} parent=229 // pred_check_branch
              %1159 = sbr.rel (0) target = $region245
            $region244: #{custom-call.2} parent=229 // pred_region
              %s1161 = ssub.s32 16, 1
              loop: start=0, step=1, limit=1
              $region246: #{custom-call.2} parent=244 // loop_pre_header
                _
              $region247: #{custom-call.2} parent=244 // loop_header
                %s1163 = sphi 0, %s1167
                %p1164 = scmp.ge.s32.totalorder %s1163, 1
                %s1168 = sphi %s1047, %s1047
                %s1169 = sphi %s1139, %s1139
              $region248: #{custom-call.2} parent=244 // loop_header_branch
                %1166 = sbr.rel (%p1164) target = $region252
              $region249: #{custom-call.2} parent=244 // loop_body
                %v1170 = vld [vmem:[%s1168] sm:%s1161]
                %1171 = vst [vmem:[%s1169] sm:%s1161] %v1170
              $region250: #{custom-call.2} parent=244 // loop_footer
                %s1167 = sadd.s32 1, %s1163
              $region251: #{custom-call.2} parent=244 // loop_footer_branch
                %1162 = sbr.rel target = $region247
              $region252: #{custom-call.2} parent=244 // loop_exit
                _
            $region245: #{custom-call.2} parent=229 // pred_fallthru
              _
          $region230: #{custom-call.2} parent=225 // pred_fallthru
            _
          // Predicated region
          $region231: #{custom-call.2} parent=225 // pred_check
            _
          $region232: #{custom-call.2} parent=225 // pred_check_branch
            %1145 = sbr.rel (0) target = $region234
          $region233: #{custom-call.2} parent=225 // pred_region
            %s1147 = ssub.s32 16, 1
            loop: start=0, step=1, limit=1
            $region235: #{custom-call.2} parent=233 // loop_pre_header
              _
            $region236: #{custom-call.2} parent=233 // loop_header
              %s1149 = sphi 0, %s1153
              %p1150 = scmp.ge.s32.totalorder %s1149, 1
              %s1154 = sphi %s1047, %s1047
              %s1155 = sphi %s1139, %s1139
            $region237: #{custom-call.2} parent=233 // loop_header_branch
              %1152 = sbr.rel (%p1150) target = $region241
            $region238: #{custom-call.2} parent=233 // loop_body
              %v1156 = vld [vmem:[%s1154] sm:%s1147]
              %1157 = vst [vmem:[%s1155] sm:%s1147] %v1156
            $region239: #{custom-call.2} parent=233 // loop_footer
              %s1153 = sadd.s32 1, %s1149
            $region240: #{custom-call.2} parent=233 // loop_footer_branch
              %1148 = sbr.rel target = $region236
            $region241: #{custom-call.2} parent=233 // loop_exit
              _
          $region234: #{custom-call.2} parent=225 // pred_fallthru
            _
        $region226: #{custom-call.2} parent=139 // pred_fallthru
          _
        %1172 = vnop
        %s1173 = smul.addr %s17, 4
        %s1174 = scalar_lea.vmem %s7, %s1173
        // Predicated region
        $region253: #{custom-call.2} parent=139 // pred_check
          _
        $region254: #{custom-call.2} parent=139 // pred_check_branch
          %1176 = sbr.rel (0) target = $region256
        $region255: #{custom-call.2} parent=139 // pred_region
          // Predicated region
          $region257: #{custom-call.2} parent=255 // pred_check
            _
          $region258: #{custom-call.2} parent=255 // pred_check_branch
            %1178 = sbr.rel target = $region260
          $region259: #{custom-call.2} parent=255 // pred_region
            // Predicated region
            $region272: #{custom-call.2} parent=259 // pred_check
              _
            $region273: #{custom-call.2} parent=259 // pred_check_branch
              %1194 = sbr.rel (0) target = $region275
            $region274: #{custom-call.2} parent=259 // pred_region
              %s1196 = ssub.s32 16, 1
              loop: start=0, step=1, limit=1
              $region276: #{custom-call.2} parent=274 // loop_pre_header
                _
              $region277: #{custom-call.2} parent=274 // loop_header
                %s1198 = sphi 0, %s1202
                %p1199 = scmp.ge.s32.totalorder %s1198, 1
                %s1203 = sphi %s1051, %s1051
                %s1204 = sphi %s1174, %s1174
              $region278: #{custom-call.2} parent=274 // loop_header_branch
                %1201 = sbr.rel (%p1199) target = $region282
              $region279: #{custom-call.2} parent=274 // loop_body
                %v1205 = vld [vmem:[%s1203] sm:%s1196]
                %1206 = vst [vmem:[%s1204] sm:%s1196] %v1205
              $region280: #{custom-call.2} parent=274 // loop_footer
                %s1202 = sadd.s32 1, %s1198
              $region281: #{custom-call.2} parent=274 // loop_footer_branch
                %1197 = sbr.rel target = $region277
              $region282: #{custom-call.2} parent=274 // loop_exit
                _
            $region275: #{custom-call.2} parent=259 // pred_fallthru
              _
          $region260: #{custom-call.2} parent=255 // pred_fallthru
            _
          // Predicated region
          $region261: #{custom-call.2} parent=255 // pred_check
            _
          $region262: #{custom-call.2} parent=255 // pred_check_branch
            %1180 = sbr.rel (0) target = $region264
          $region263: #{custom-call.2} parent=255 // pred_region
            %s1182 = ssub.s32 16, 1
            loop: start=0, step=1, limit=1
            $region265: #{custom-call.2} parent=263 // loop_pre_header
              _
            $region266: #{custom-call.2} parent=263 // loop_header
              %s1184 = sphi 0, %s1188
              %p1185 = scmp.ge.s32.totalorder %s1184, 1
              %s1189 = sphi %s1051, %s1051
              %s1190 = sphi %s1174, %s1174
            $region267: #{custom-call.2} parent=263 // loop_header_branch
              %1187 = sbr.rel (%p1185) target = $region271
            $region268: #{custom-call.2} parent=263 // loop_body
              %v1191 = vld [vmem:[%s1189] sm:%s1182]
              %1192 = vst [vmem:[%s1190] sm:%s1182] %v1191
            $region269: #{custom-call.2} parent=263 // loop_footer
              %s1188 = sadd.s32 1, %s1184
            $region270: #{custom-call.2} parent=263 // loop_footer_branch
              %1183 = sbr.rel target = $region266
            $region271: #{custom-call.2} parent=263 // loop_exit
              _
          $region264: #{custom-call.2} parent=255 // pred_fallthru
            _
        $region256: #{custom-call.2} parent=139 // pred_fallthru
          _
        %1207 = vnop
        %s1208 = smul.addr %s17, 4
        %s1209 = scalar_lea.vmem %s8, %s1208
        // Predicated region
        $region283: #{custom-call.2} parent=139 // pred_check
          _
        $region284: #{custom-call.2} parent=139 // pred_check_branch
          %1211 = sbr.rel (0) target = $region286
        $region285: #{custom-call.2} parent=139 // pred_region
          // Predicated region
          $region287: #{custom-call.2} parent=285 // pred_check
            _
          $region288: #{custom-call.2} parent=285 // pred_check_branch
            %1213 = sbr.rel target = $region290
          $region289: #{custom-call.2} parent=285 // pred_region
            // Predicated region
            $region302: #{custom-call.2} parent=289 // pred_check
              _
            $region303: #{custom-call.2} parent=289 // pred_check_branch
              %1229 = sbr.rel (0) target = $region305
            $region304: #{custom-call.2} parent=289 // pred_region
              %s1231 = ssub.s32 16, 1
              loop: start=0, step=1, limit=1
              $region306: #{custom-call.2} parent=304 // loop_pre_header
                _
              $region307: #{custom-call.2} parent=304 // loop_header
                %s1233 = sphi 0, %s1237
                %p1234 = scmp.ge.s32.totalorder %s1233, 1
                %s1238 = sphi %s1055, %s1055
                %s1239 = sphi %s1209, %s1209
              $region308: #{custom-call.2} parent=304 // loop_header_branch
                %1236 = sbr.rel (%p1234) target = $region312
              $region309: #{custom-call.2} parent=304 // loop_body
                %v1240 = vld [vmem:[%s1238] sm:%s1231]
                %1241 = vst [vmem:[%s1239] sm:%s1231] %v1240
              $region310: #{custom-call.2} parent=304 // loop_footer
                %s1237 = sadd.s32 1, %s1233
              $region311: #{custom-call.2} parent=304 // loop_footer_branch
                %1232 = sbr.rel target = $region307
              $region312: #{custom-call.2} parent=304 // loop_exit
                _
            $region305: #{custom-call.2} parent=289 // pred_fallthru
              _
          $region290: #{custom-call.2} parent=285 // pred_fallthru
            _
          // Predicated region
          $region291: #{custom-call.2} parent=285 // pred_check
            _
          $region292: #{custom-call.2} parent=285 // pred_check_branch
            %1215 = sbr.rel (0) target = $region294
          $region293: #{custom-call.2} parent=285 // pred_region
            %s1217 = ssub.s32 16, 1
            loop: start=0, step=1, limit=1
            $region295: #{custom-call.2} parent=293 // loop_pre_header
              _
            $region296: #{custom-call.2} parent=293 // loop_header
              %s1219 = sphi 0, %s1223
              %p1220 = scmp.ge.s32.totalorder %s1219, 1
              %s1224 = sphi %s1055, %s1055
              %s1225 = sphi %s1209, %s1209
            $region297: #{custom-call.2} parent=293 // loop_header_branch
              %1222 = sbr.rel (%p1220) target = $region301
            $region298: #{custom-call.2} parent=293 // loop_body
              %v1226 = vld [vmem:[%s1224] sm:%s1217]
              %1227 = vst [vmem:[%s1225] sm:%s1217] %v1226
            $region299: #{custom-call.2} parent=293 // loop_footer
              %s1223 = sadd.s32 1, %s1219
            $region300: #{custom-call.2} parent=293 // loop_footer_branch
              %1218 = sbr.rel target = $region296
            $region301: #{custom-call.2} parent=293 // loop_exit
              _
          $region294: #{custom-call.2} parent=285 // pred_fallthru
            _
        $region286: #{custom-call.2} parent=139 // pred_fallthru
          _
        %1242 = vnop
        %s1243 = smul.addr %s17, 4
        %s1244 = scalar_lea.vmem %s9, %s1243
        // Predicated region
        $region313: #{custom-call.2} parent=139 // pred_check
          _
        $region314: #{custom-call.2} parent=139 // pred_check_branch
          %1246 = sbr.rel (0) target = $region316
        $region315: #{custom-call.2} parent=139 // pred_region
          // Predicated region
          $region317: #{custom-call.2} parent=315 // pred_check
            _
          $region318: #{custom-call.2} parent=315 // pred_check_branch
            %1248 = sbr.rel target = $region320
          $region319: #{custom-call.2} parent=315 // pred_region
            // Predicated region
            $region332: #{custom-call.2} parent=319 // pred_check
              _
            $region333: #{custom-call.2} parent=319 // pred_check_branch
              %1264 = sbr.rel (0) target = $region335
            $region334: #{custom-call.2} parent=319 // pred_region
              %s1266 = ssub.s32 16, 1
              loop: start=0, step=1, limit=1
              $region336: #{custom-call.2} parent=334 // loop_pre_header
                _
              $region337: #{custom-call.2} parent=334 // loop_header
                %s1268 = sphi 0, %s1272
                %p1269 = scmp.ge.s32.totalorder %s1268, 1
                %s1273 = sphi %s1059, %s1059
                %s1274 = sphi %s1244, %s1244
              $region338: #{custom-call.2} parent=334 // loop_header_branch
                %1271 = sbr.rel (%p1269) target = $region342
              $region339: #{custom-call.2} parent=334 // loop_body
                %v1275 = vld [vmem:[%s1273] sm:%s1266]
                %1276 = vst [vmem:[%s1274] sm:%s1266] %v1275
              $region340: #{custom-call.2} parent=334 // loop_footer
                %s1272 = sadd.s32 1, %s1268
              $region341: #{custom-call.2} parent=334 // loop_footer_branch
                %1267 = sbr.rel target = $region337
              $region342: #{custom-call.2} parent=334 // loop_exit
                _
            $region335: #{custom-call.2} parent=319 // pred_fallthru
              _
          $region320: #{custom-call.2} parent=315 // pred_fallthru
            _
          // Predicated region
          $region321: #{custom-call.2} parent=315 // pred_check
            _
          $region322: #{custom-call.2} parent=315 // pred_check_branch
            %1250 = sbr.rel (0) target = $region324
          $region323: #{custom-call.2} parent=315 // pred_region
            %s1252 = ssub.s32 16, 1
            loop: start=0, step=1, limit=1
            $region325: #{custom-call.2} parent=323 // loop_pre_header
              _
            $region326: #{custom-call.2} parent=323 // loop_header
              %s1254 = sphi 0, %s1258
              %p1255 = scmp.ge.s32.totalorder %s1254, 1
              %s1259 = sphi %s1059, %s1059
              %s1260 = sphi %s1244, %s1244
            $region327: #{custom-call.2} parent=323 // loop_header_branch
              %1257 = sbr.rel (%p1255) target = $region331
            $region328: #{custom-call.2} parent=323 // loop_body
              %v1261 = vld [vmem:[%s1259] sm:%s1252]
              %1262 = vst [vmem:[%s1260] sm:%s1252] %v1261
            $region329: #{custom-call.2} parent=323 // loop_footer
              %s1258 = sadd.s32 1, %s1254
            $region330: #{custom-call.2} parent=323 // loop_footer_branch
              %1253 = sbr.rel target = $region326
            $region331: #{custom-call.2} parent=323 // loop_exit
              _
          $region324: #{custom-call.2} parent=315 // pred_fallthru
            _
        $region316: #{custom-call.2} parent=139 // pred_fallthru
          _
        %1277 = vnop
      $region140: #{custom-call.2} parent=5 // pred_fallthru
        _
      %p1278 = scmp.le.s32.totalorder 2, %s12
      // Predicated region
      $region343: #{custom-call.2} parent=5 // pred_check
        %p1279 = pneg %p1278
      $region344: #{custom-call.2} parent=5 // pred_check_branch
        %1281 = sbr.rel (%p1279) target = $region346
      $region345: #{custom-call.2} parent=5 // pred_region
        %s1282 = ssub.s32 %s12, 2
        // Predicated region
        $region347: #{custom-call.2} parent=345 // pred_check
          %p1283 = pneg %p43
        $region348: #{custom-call.2} parent=345 // pred_check_branch
          %1285 = sbr.rel (%p1283) target = $region350
        $region349: #{custom-call.2} parent=345 // pred_region
          %s1286 = sand.u32 %s28, 1
          %s1287 = sand.u32 %s28, 1
          %s1288 = smul.addr %s1287, 2
          %s1289 = scalar_lea.vmem [#allocation9], %s1288
        $region350: #{custom-call.2} parent=345 // pred_fallthru
          _
        // Predicated region
        $region351: #{custom-call.2} parent=345 // pred_check
          %p1290 = pneg %p71
        $region352: #{custom-call.2} parent=345 // pred_check_branch
          %1292 = sbr.rel (%p1290) target = $region354
        $region353: #{custom-call.2} parent=345 // pred_region
          %s1293 = sand.u32 %s56, 1
          %s1294 = sand.u32 %s56, 1
          %s1295 = smul.addr %s1294, 2
          %s1296 = scalar_lea.vmem [#allocation11], %s1295
        $region354: #{custom-call.2} parent=345 // pred_fallthru
          _
        %s1297 = sand.u32 %s18, 1
        %s1298 = sand.u32 %s18, 1
        %s1299 = smul.addr %s1298, 4
        %s1300 = scalar_lea.vmem [#allocation13], %s1299
        %s1301 = sand.u32 %s18, 1
        %s1302 = sand.u32 %s18, 1
        %s1303 = smul.addr %s1302, 4
        %s1304 = scalar_lea.vmem [#allocation15], %s1303
        %s1305 = sand.u32 %s18, 1
        %s1306 = sand.u32 %s18, 1
        %s1307 = smul.addr %s1306, 4
        %s1308 = scalar_lea.vmem [#allocation17], %s1307
        %s1309 = sand.u32 %s18, 1
        %s1310 = sand.u32 %s18, 1
        %s1311 = smul.addr %s1310, 4
        %s1312 = scalar_lea.vmem [#allocation19], %s1311
      $region346: #{custom-call.2} parent=5 // pred_fallthru
        _
    $region6: #{custom-call.2} parent=1 // loop_footer
      %s16 = sadd.s32 1, %s12
    $region7: #{custom-call.2} parent=1 // loop_footer_branch
      %11 = sbr.rel target = $region3
    $region8: #{custom-call.2} parent=1 // loop_exit
      _

// kernel: seb_forward.2
$region0: #{seb_forward.2}
  #allocation0 [shape = 'u32[]', space=smem, size = 0x4, offset = 0x4, fixed_abs, tag = 'smem constant byte address 0x4 - core index']
  #allocation1 [shape = 'u32[72,128]{1,0:T(1,128)}', space=vmem, size = 0x9000, scoped, tag = 'internal scratch']
  #allocation2 [shape = 'f32[1,1,8]{2,1,0:T(1,128)}', space=vmem, size = 0x200, scoped, tag = 'scratch operand']
  %s0 = inlined_call_operand.vmem [shape: f32[2,8,16], index: 0, kind: input, shape index: {}]
  %s1 = inlined_call_operand.vmem [shape: f32[2,8,8], index: 1, kind: output, shape index: {}]
  %s2 = sld [smem:[#allocation0]]
  $region45: #{seb_forward.2} parent=0
    _
  %s4 = ssub.s32 1, %s2
  %s5 = scalar_select 0, %s4, %s2
  loop: start=0, step=1, limit=4
  $region2: #{seb_forward.2} parent=0 // loop_pre_header
    _
  $region3: #{seb_forward.2} parent=0 // loop_header
    %s7 = sphi 0, %s11
    %p8 = scmp.ge.s32.totalorder %s7, 4
    %s14 = sphi 0, %s26
    %s15 = sphi 0, %s22
    %s16 = sphi 0, %s14
    %s17 = sphi 0, %s15
    %s18 = sphi 0, %s16
    %s19 = sphi 0, %s17
    %s31 = sphi 0, %s33
    %s34 = sphi 0, %s31
    %s35 = sphi 0, %s34
    %s51 = sphi 0, %s35
    %s57 = sphi 0, %s59
    %s60 = sphi 0, %s57
    %s61 = sphi 0, %s60
    %s77 = sphi 0, %s61
  $region4: #{seb_forward.2} parent=0 // loop_header_branch
    %10 = sbr.rel (%p8) target = $region8
  $region5: #{seb_forward.2} parent=0 // loop_body
    %s12 = ssub.s32 %s7, 1
    %s13 = ssub.s32 %s7, 2
    %s20 = sadd.s32 1, %s15
    %p21 = scmp.ge.s32.totalorder %s20, 1
    %s22 = scalar_select %p21, 0, %s20
    %s23 = sadd.s32 1, %s14
    %s24 = scalar_select %p21, %s23, %s14
    %p25 = scmp.ge.s32.totalorder %s24, 2
    %s26 = scalar_select %p25, 0, %s24
    %s27 = ssub.s32 %s14, %s26
    %s28 = ssub.s32 %s15, %s22
    %s29 = sor.u32 %s27, %s28
    %p30 = scmp.eq.s32.totalorder %s29, 0
    %s32 = sadd.s32 %s31, 1
    %s33 = scalar_select %p30, %s31, %s32
    %p36 = pneg %p30
    %p37 = scmp.eq.s32.totalorder %s7, 1
    %p38 = por %p36, %p37
    %p39 = scmp.ne.s32.totalorder %s31, %s34
    %p40 = scmp.eq.s32.totalorder %s7, 0
    %p41 = por %p39, %p40
    %p42 = scmp.ne.s32.totalorder %s31, %s34
    %p43 = scmp.eq.s32.totalorder %s12, 1
    %p44 = por %p42, %p43
    %p45 = scmp.ne.s32.totalorder %s34, %s35
    %p46 = scmp.eq.s32.totalorder %s12, 0
    %p47 = por %p45, %p46
    %p48 = scmp.ne.s32.totalorder %s34, %s35
    %p49 = scmp.eq.s32.totalorder %s13, 1
    %p50 = por %p48, %p49
    %p52 = scmp.ne.s32.totalorder %s35, %s51
    %p53 = scmp.eq.s32.totalorder %s13, 0
    %p54 = por %p52, %p53
    %s55 = ssub.s32 %s14, %s26
    %p56 = scmp.eq.s32.totalorder %s55, 0
    %s58 = sadd.s32 %s57, 1
    %s59 = scalar_select %p56, %s57, %s58
    %p62 = pneg %p56
    %p63 = scmp.eq.s32.totalorder %s7, 1
    %p64 = por %p62, %p63
    %p65 = scmp.ne.s32.totalorder %s57, %s60
    %p66 = scmp.eq.s32.totalorder %s7, 0
    %p67 = por %p65, %p66
    %p68 = scmp.ne.s32.totalorder %s57, %s60
    %p69 = scmp.eq.s32.totalorder %s12, 1
    %p70 = por %p68, %p69
    %p71 = scmp.ne.s32.totalorder %s60, %s61
    %p72 = scmp.eq.s32.totalorder %s12, 0
    %p73 = por %p71, %p72
    %p74 = scmp.ne.s32.totalorder %s60, %s61
    %p75 = scmp.eq.s32.totalorder %s13, 1
    %p76 = por %p74, %p75
    %p78 = scmp.ne.s32.totalorder %s61, %s77
    %p79 = scmp.eq.s32.totalorder %s13, 0
    %p80 = por %p78, %p79
    %p81 = scmp.le.s32.totalorder 1, %s7
    %p82 = scmp.lt.s32.totalorder %s7, 3
    %p83 = pnand %p81, %p82
    %p84 = pneg %p83
    // Predicated region
    $region9: #{seb_forward.2} parent=5 // pred_check
      _
    $region10: #{seb_forward.2} parent=5 // pred_check_branch
      %86 = sbr.rel (%p83) target = $region12
    $region11: #{seb_forward.2} parent=5 // pred_region
      %s87 = ssub.s32 %s7, 1
    $region12: #{seb_forward.2} parent=5 // pred_fallthru
      _
    %p88 = scmp.lt.s32.totalorder %s7, 2
    // Predicated region
    $region13: #{seb_forward.2} parent=5 // pred_check
      %p89 = pneg %p88
    $region14: #{seb_forward.2} parent=5 // pred_check_branch
      %91 = sbr.rel (%p89) target = $region16
    $region15: #{seb_forward.2} parent=5 // pred_region
      // Predicated region
      $region17: #{seb_forward.2} parent=15 // pred_check
        %p92 = pneg %p41
      $region18: #{seb_forward.2} parent=15 // pred_check_branch
        %94 = sbr.rel (%p92) target = $region20
      $region19: #{seb_forward.2} parent=15 // pred_region
        %p95 = scmp.lt.s32.totalorder %s14, 1
        %s96 = scalar_select %p95, %s14, 1
        %p97 = scmp.lt.s32.totalorder %s15, 0
        %s98 = scalar_select %p97, %s15, 0
        %s99 = sadd.s32 %s98, %s96
        %s100 = smul.addr %s99, 8
        %s101 = scalar_lea.vmem %s0, %s100
      $region20: #{seb_forward.2} parent=15 // pred_fallthru
        _
    $region16: #{seb_forward.2} parent=5 // pred_fallthru
      _
    %p102 = scmp.le.s32.totalorder 1, %s7
    %p103 = scmp.lt.s32.totalorder %s7, 3
    %p104 = pnand %p102, %p103
    %p105 = pneg %p104
    // Predicated region
    $region21: #{seb_forward.2} parent=5 // pred_check
      _
    $region22: #{seb_forward.2} parent=5 // pred_check_branch
      %107 = sbr.rel (%p104) target = $region24
    $region23: #{seb_forward.2} parent=5 // pred_region
      %s108 = ssub.s32 %s7, 1
      %p109 = scmp.lt.s32.totalorder %s16, 1
      %s110 = scalar_select %p109, %s16, 1
      %p111 = scmp.lt.s32.totalorder %s17, 0
      %s112 = scalar_select %p111, %s17, 0
      %s113 = sadd.s32 %s112, %s110
      %s114 = smul.addr %s113, 8
      %s115 = scalar_lea.vmem %s0, %s114
      %p116 = pneg %p47
      %p117 = pneg %p44
      %p118 = pneg %p73
      %p119 = pneg %p70
      %p120 = scmp.lt.s32.totalorder %s16, 1
      %s121 = scalar_select %p120, %s16, 1
      %s122 = smul.addr %s121, 8
      %s123 = scalar_lea.vmem %s1, %s122
      %p124 = scmp.lt.s32.totalorder %s16, 1
      %s125 = scalar_select %p124, %s16, 1
      %p126 = scmp.lt.s32.totalorder %s17, 0
      %s127 = scalar_select %p126, %s17, 0
      %s128 = sadd.s32 %s127, %s125
      %s129 = smul.addr %s128, 8
      %s130 = scalar_lea.vmem %s0, %s129
      %p131 = scmp.lt.s32.totalorder %s16, 1
      %s132 = scalar_select %p131, %s16, 1
      %s133 = smul.addr %s132, 8
      %s134 = scalar_lea.vmem %s1, %s133
      %p135 = scmp.eq.s32.totalorder %s17, 0
      // Predicated region
      $region25: #{seb_forward.2} parent=23 // pred_check
        %p136 = pneg %p135
      $region26: #{seb_forward.2} parent=23 // pred_check_branch
        %138 = sbr.rel (%p136) target = $region28
      $region27: #{seb_forward.2} parent=23 // pred_region
        %vm139 = vcmask 64512
        %140 = vst.msk [vmem:[%s134] sm:$0xff] %vm139, 0.0
        %vm141 = vcmask 57344
        %142 = vst.msk [vmem:[#allocation2] sm:$0x1] %vm141, 0.0
      $region28: #{seb_forward.2} parent=23 // pred_fallthru
        _
      %v143 = vld [vmem:[%s130] sm:$0xff]
      %v144 = vld [vmem:[%s134] sm:$0xff]
      %vm145 = vcmask 130048
      %v147 = vsel %vm145, %v143, 0
      %149 = vmatpush.xpose.msra.mxu0 0.0
      %150 = vmatpush.xpose.msra.mxu0 0.0
      %151 = vmatpush.xpose.msra.mxu0 0.0
      %152 = vmatpush.xpose.msra.mxu0 0.0
      %153 = vmatpush.xpose.msra.mxu0 0.0
      %154 = vmatpush.xpose.msra.mxu0 0.0
      %155 = vmatpush.xpose.msra.mxu0 0.0
      %156 = vmatpush.xpose.msra.mxu0 0.0
      %157 = vmatpush.xpose.msra.mxu0 0.0
      %158 = vmatpush.xpose.msra.mxu0 0.0
      %159 = vmatpush.xpose.msra.mxu0 0.0
      %160 = vmatpush.xpose.msra.mxu0 0.0
      %161 = vmatpush.xpose.msra.mxu0 0.0
      %162 = vmatpush.xpose.msra.mxu0 0.0
      %163 = vmatpush.xpose.msra.mxu0 0.0
      %164 = vmatpush.xpose.msra.mxu0 %v147
      %165 = vmatmul.f32.gmra.mxu0 %v147
      %v166 = vpop.f32.mrf.mxu0
      %v167 = vadd.f32 0.0, %v166
      %168 = vdwg.mxu0
      %v169 = vadd.f32 %v144, %v167
      %vm170 = vcmask 64512
      %171 = vst.msk [vmem:[%s134] sm:$0xff] %vm170, %v169
      %v172 = vld [vmem:[#allocation2] sm:$0x1]
      %v174 = vsel %vm145, 1.0, 0
      %176 = vmatpush.xpose.msra.mxu0 0.0
      %177 = vmatpush.xpose.msra.mxu0 0.0
      %178 = vmatpush.xpose.msra.mxu0 0.0
      %179 = vmatpush.xpose.msra.mxu0 0.0
      %180 = vmatpush.xpose.msra.mxu0 0.0
      %181 = vmatpush.xpose.msra.mxu0 0.0
      %182 = vmatpush.xpose.msra.mxu0 0.0
      %183 = vmatpush.xpose.msra.mxu0 0.0
      %184 = vmatpush.xpose.msra.mxu0 0.0
      %185 = vmatpush.xpose.msra.mxu0 0.0
      %186 = vmatpush.xpose.msra.mxu0 0.0
      %187 = vmatpush.xpose.msra.mxu0 0.0
      %188 = vmatpush.xpose.msra.mxu0 0.0
      %189 = vmatpush.xpose.msra.mxu0 0.0
      %190 = vmatpush.xpose.msra.mxu0 0.0
      %191 = vmatpush.xpose.msra.mxu0 %v147
      %192 = vmatmul.f32.gmra.mxu0 %v174
      %v193 = vpop.f32.mrf.mxu0
      %v194 = vadd.f32 0.0, %v193
      %195 = vdwg.mxu0
      %v196 = vadd.f32 %v172, %v194
      %vm197 = vcmask 57344
      %198 = vst.msk [vmem:[#allocation2] sm:$0x1] %vm197, %v196
      // Predicated region
      $region29: #{seb_forward.2} parent=23 // pred_check
        %p199 = pneg %p135
      $region30: #{seb_forward.2} parent=23 // pred_check_branch
        %201 = sbr.rel (%p199) target = $region32
      $region31: #{seb_forward.2} parent=23 // pred_region
        %v202 = vld [vmem:[#allocation2] sm:$0x1]
        %203 = vxpose.xlu0.b32.start [1/16] %v202, 128
        %204 = vxpose.xlu0.b32.cont [2/16] 0.0, 128
        %205 = vxpose.xlu0.b32.cont [3/16] 0.0, 128
        %206 = vxpose.xlu0.b32.cont [4/16] 0.0, 128
        %207 = vxpose.xlu0.b32.cont [5/16] 0.0, 128
        %208 = vxpose.xlu0.b32.cont [6/16] 0.0, 128
        %209 = vxpose.xlu0.b32.cont [7/16] 0.0, 128
        %210 = vxpose.xlu0.b32.cont [8/16] 0.0, 128
        %211 = vxpose.xlu0.b32.cont [9/16] 0.0, 128
        %212 = vxpose.xlu0.b32.cont [10/16] 0.0, 128
        %213 = vxpose.xlu0.b32.cont [11/16] 0.0, 128
        %214 = vxpose.xlu0.b32.cont [12/16] 0.0, 128
        %215 = vxpose.xlu0.b32.cont [13/16] 0.0, 128
        %216 = vxpose.xlu0.b32.cont [14/16] 0.0, 128
        %217 = vxpose.xlu0.b32.cont [15/16] 0.0, 128
        %218 = vxpose.xlu0.b32.end [16/16] 0.0, 128
        %v219 = vpop.trf.xlu0
        %v220 = vpop.trf.xlu0
        %v221 = vpop.trf.xlu0
        %v222 = vpop.trf.xlu0
        %v223 = vpop.trf.xlu0
        %v224 = vpop.trf.xlu0
        %v225 = vpop.trf.xlu0
        %v226 = vpop.trf.xlu0
        %v227 = vpop.trf.xlu0
        %v228 = vpop.trf.xlu0
        %v229 = vpop.trf.xlu0
        %v230 = vpop.trf.xlu0
        %v231 = vpop.trf.xlu0
        %v232 = vpop.trf.xlu0
        %v233 = vpop.trf.xlu0
        %v234 = vpop.trf.xlu0
        %vm235 = vcmask 7168
        %v237 = vsel %vm235, %v219, 0
        %vm239 = vcmask 1040384
        %v241 = vsel %vm239, %v202, 0
        %243 = vmatpush.msra.mxu0 0.0
        %244 = vmatpush.msra.mxu0 0.0
        %245 = vmatpush.msra.mxu0 0.0
        %246 = vmatpush.msra.mxu0 0.0
        %247 = vmatpush.msra.mxu0 0.0
        %248 = vmatpush.msra.mxu0 0.0
        %249 = vmatpush.msra.mxu0 0.0
        %250 = vmatpush.msra.mxu0 0.0
        %251 = vmatpush.msra.mxu0 0.0
        %252 = vmatpush.msra.mxu0 0.0
        %253 = vmatpush.msra.mxu0 0.0
        %254 = vmatpush.msra.mxu0 0.0
        %255 = vmatpush.msra.mxu0 0.0
        %256 = vmatpush.msra.mxu0 0.0
        %257 = vmatpush.msra.mxu0 0.0
        %258 = vmatpush.msra.mxu0 %v241
        %259 = vmatmul.f32.gmra.mxu0 %v237
        %v260 = vpop.f32.mrf.mxu0
        %v261 = vadd.f32 0.0, %v260
        %262 = vdwg.mxu0
        %v263 = vld [vmem:[%s134] sm:$0xff]
        %v264 = vmul.f32 %v263, 0.0625
        %v265 = vmul.f32 %v261, 0.00390625
        %v266 = vsub.f32 %v264, %v265
        %267 = vst.msk [vmem:[%s134] sm:$0xff] %vm170, %v266
      $region32: #{seb_forward.2} parent=23 // pred_fallthru
        _
      %p268 = scmp.lt.s32.totalorder %s16, 1
      %s269 = scalar_select %p268, %s16, 1
      %s270 = smul.addr %s269, 8
      %s271 = scalar_lea.vmem %s1, %s270
      // Predicated region
      $region33: #{seb_forward.2} parent=23 // pred_check
        %p272 = pneg %p70
      $region34: #{seb_forward.2} parent=23 // pred_check_branch
        %274 = sbr.rel (%p272) target = $region36
      $region35: #{seb_forward.2} parent=23 // pred_region
        _
      $region36: #{seb_forward.2} parent=23 // pred_fallthru
        _
    $region24: #{seb_forward.2} parent=5 // pred_fallthru
      _
    %p275 = scmp.le.s32.totalorder 2, %s7
    // Predicated region
    $region37: #{seb_forward.2} parent=5 // pred_check
      %p276 = pneg %p275
    $region38: #{seb_forward.2} parent=5 // pred_check_branch
      %278 = sbr.rel (%p276) target = $region40
    $region39: #{seb_forward.2} parent=5 // pred_region
      %s279 = ssub.s32 %s7, 2
      // Predicated region
      $region41: #{seb_forward.2} parent=39 // pred_check
        %p280 = pneg %p76
      $region42: #{seb_forward.2} parent=39 // pred_check_branch
        %282 = sbr.rel (%p280) target = $region44
      $region43: #{seb_forward.2} parent=39 // pred_region
        %p283 = scmp.lt.s32.totalorder %s18, 1
        %s284 = scalar_select %p283, %s18, 1
        %s285 = smul.addr %s284, 8
        %s286 = scalar_lea.vmem %s1, %s285
      $region44: #{seb_forward.2} parent=39 // pred_fallthru
        _
    $region40: #{seb_forward.2} parent=5 // pred_fallthru
      _
  $region6: #{seb_forward.2} parent=0 // loop_footer
    %s11 = sadd.s32 1, %s7
  $region7: #{seb_forward.2} parent=0 // loop_footer_branch
    %6 = sbr.rel target = $region3
  $region8: #{seb_forward.2} parent=0 // loop_exit
    _

// kernel: seb_forward.3
$region0: #{seb_forward.3}
  #allocation0 [shape = 'u32[]', space=smem, size = 0x4, offset = 0x4, fixed_abs, tag = 'smem constant byte address 0x4 - core index']
  #allocation1 [shape = 'u32[72,128]{1,0:T(1,128)}', space=vmem, size = 0x9000, scoped, tag = 'internal scratch']
  %s0 = inlined_call_operand.vmem [shape: f32[2,8,8], index: 0, kind: input, shape index: {}]
  %s1 = inlined_call_operand.vmem [shape: f32[2,1,8], index: 1, kind: input, shape index: {}]
  %s2 = inlined_call_operand.vmem [shape: f32[2,8,8], index: 2, kind: output, shape index: {}]
  %s3 = sld [smem:[#allocation0]]
  $region41: #{seb_forward.3} parent=0
    _
  %s5 = ssub.s32 1, %s3
  %s6 = scalar_select 0, %s5, %s3
  loop: start=0, step=1, limit=4
  $region2: #{seb_forward.3} parent=0 // loop_pre_header
    _
  $region3: #{seb_forward.3} parent=0 // loop_header
    %s8 = sphi 0, %s12
    %p9 = scmp.ge.s32.totalorder %s8, 4
    %s18 = sphi 0, %s20
    %s21 = sphi 0, %s18
    %s22 = sphi 0, %s21
    %s38 = sphi 0, %s22
    %s44 = sphi 0, %s46
    %s47 = sphi 0, %s44
    %s48 = sphi 0, %s47
    %s64 = sphi 0, %s48
    %s70 = sphi 0, %s72
    %s73 = sphi 0, %s70
    %s74 = sphi 0, %s73
    %s90 = sphi 0, %s74
  $region4: #{seb_forward.3} parent=0 // loop_header_branch
    %11 = sbr.rel (%p9) target = $region8
  $region5: #{seb_forward.3} parent=0 // loop_body
    %s13 = ssub.s32 %s8, 1
    %s14 = ssub.s32 %s8, 2
    %s15 = sadd.s32 %s8, 1
    %s16 = ssub.s32 %s8, %s15
    %p17 = scmp.eq.s32.totalorder %s16, 0
    %s19 = sadd.s32 %s18, 1
    %s20 = scalar_select %p17, %s18, %s19
    %p23 = pneg %p17
    %p24 = scmp.eq.s32.totalorder %s8, 1
    %p25 = por %p23, %p24
    %p26 = scmp.ne.s32.totalorder %s18, %s21
    %p27 = scmp.eq.s32.totalorder %s8, 0
    %p28 = por %p26, %p27
    %p29 = scmp.ne.s32.totalorder %s18, %s21
    %p30 = scmp.eq.s32.totalorder %s13, 1
    %p31 = por %p29, %p30
    %p32 = scmp.ne.s32.totalorder %s21, %s22
    %p33 = scmp.eq.s32.totalorder %s13, 0
    %p34 = por %p32, %p33
    %p35 = scmp.ne.s32.totalorder %s21, %s22
    %p36 = scmp.eq.s32.totalorder %s14, 1
    %p37 = por %p35, %p36
    %p39 = scmp.ne.s32.totalorder %s22, %s38
    %p40 = scmp.eq.s32.totalorder %s14, 0
    %p41 = por %p39, %p40
    %s42 = ssub.s32 %s8, %s15
    %p43 = scmp.eq.s32.totalorder %s42, 0
    %s45 = sadd.s32 %s44, 1
    %s46 = scalar_select %p43, %s44, %s45
    %p49 = pneg %p43
    %p50 = scmp.eq.s32.totalorder %s8, 1
    %p51 = por %p49, %p50
    %p52 = scmp.ne.s32.totalorder %s44, %s47
    %p53 = scmp.eq.s32.totalorder %s8, 0
    %p54 = por %p52, %p53
    %p55 = scmp.ne.s32.totalorder %s44, %s47
    %p56 = scmp.eq.s32.totalorder %s13, 1
    %p57 = por %p55, %p56
    %p58 = scmp.ne.s32.totalorder %s47, %s48
    %p59 = scmp.eq.s32.totalorder %s13, 0
    %p60 = por %p58, %p59
    %p61 = scmp.ne.s32.totalorder %s47, %s48
    %p62 = scmp.eq.s32.totalorder %s14, 1
    %p63 = por %p61, %p62
    %p65 = scmp.ne.s32.totalorder %s48, %s64
    %p66 = scmp.eq.s32.totalorder %s14, 0
    %p67 = por %p65, %p66
    %s68 = ssub.s32 %s8, %s15
    %p69 = scmp.eq.s32.totalorder %s68, 0
    %s71 = sadd.s32 %s70, 1
    %s72 = scalar_select %p69, %s70, %s71
    %p75 = pneg %p69
    %p76 = scmp.eq.s32.totalorder %s8, 1
    %p77 = por %p75, %p76
    %p78 = scmp.ne.s32.totalorder %s70, %s73
    %p79 = scmp.eq.s32.totalorder %s8, 0
    %p80 = por %p78, %p79
    %p81 = scmp.ne.s32.totalorder %s70, %s73
    %p82 = scmp.eq.s32.totalorder %s13, 1
    %p83 = por %p81, %p82
    %p84 = scmp.ne.s32.totalorder %s73, %s74
    %p85 = scmp.eq.s32.totalorder %s13, 0
    %p86 = por %p84, %p85
    %p87 = scmp.ne.s32.totalorder %s73, %s74
    %p88 = scmp.eq.s32.totalorder %s14, 1
    %p89 = por %p87, %p88
    %p91 = scmp.ne.s32.totalorder %s74, %s90
    %p92 = scmp.eq.s32.totalorder %s14, 0
    %p93 = por %p91, %p92
    %p94 = scmp.le.s32.totalorder 1, %s8
    %p95 = scmp.lt.s32.totalorder %s8, 3
    %p96 = pnand %p94, %p95
    %p97 = pneg %p96
    // Predicated region
    $region9: #{seb_forward.3} parent=5 // pred_check
      _
    $region10: #{seb_forward.3} parent=5 // pred_check_branch
      %99 = sbr.rel (%p96) target = $region12
    $region11: #{seb_forward.3} parent=5 // pred_region
      %s100 = ssub.s32 %s8, 1
    $region12: #{seb_forward.3} parent=5 // pred_fallthru
      _
    %p101 = scmp.lt.s32.totalorder %s8, 2
    // Predicated region
    $region13: #{seb_forward.3} parent=5 // pred_check
      %p102 = pneg %p101
    $region14: #{seb_forward.3} parent=5 // pred_check_branch
      %104 = sbr.rel (%p102) target = $region16
    $region15: #{seb_forward.3} parent=5 // pred_region
      // Predicated region
      $region17: #{seb_forward.3} parent=15 // pred_check
        %p105 = pneg %p28
      $region18: #{seb_forward.3} parent=15 // pred_check_branch
        %107 = sbr.rel (%p105) target = $region20
      $region19: #{seb_forward.3} parent=15 // pred_region
        %p108 = scmp.lt.s32.totalorder %s8, 1
        %s109 = scalar_select %p108, %s8, 1
        %s110 = smul.addr %s109, 8
        %s111 = scalar_lea.vmem %s0, %s110
      $region20: #{seb_forward.3} parent=15 // pred_fallthru
        _
      // Predicated region
      $region21: #{seb_forward.3} parent=15 // pred_check
        %p112 = pneg %p54
      $region22: #{seb_forward.3} parent=15 // pred_check_branch
        %114 = sbr.rel (%p112) target = $region24
      $region23: #{seb_forward.3} parent=15 // pred_region
        %p115 = scmp.lt.s32.totalorder %s8, 1
        %s116 = scalar_select %p115, %s8, 1
        %s117 = scalar_lea.vmem %s1, %s116
      $region24: #{seb_forward.3} parent=15 // pred_fallthru
        _
    $region16: #{seb_forward.3} parent=5 // pred_fallthru
      _
    %p118 = scmp.le.s32.totalorder 1, %s8
    %p119 = scmp.lt.s32.totalorder %s8, 3
    %p120 = pnand %p118, %p119
    %p121 = pneg %p120
    // Predicated region
    $region25: #{seb_forward.3} parent=5 // pred_check
      _
    $region26: #{seb_forward.3} parent=5 // pred_check_branch
      %123 = sbr.rel (%p120) target = $region28
    $region27: #{seb_forward.3} parent=5 // pred_region
      %s124 = ssub.s32 %s8, 1
      %p125 = scmp.lt.s32.totalorder %s13, 1
      %s126 = scalar_select %p125, %s13, 1
      %s127 = smul.addr %s126, 8
      %s128 = scalar_lea.vmem %s0, %s127
      %p129 = pneg %p34
      %p130 = pneg %p31
      %p131 = scmp.lt.s32.totalorder %s13, 1
      %s132 = scalar_select %p131, %s13, 1
      %s133 = scalar_lea.vmem %s1, %s132
      %p134 = pneg %p60
      %p135 = pneg %p57
      %p136 = pneg %p86
      %p137 = pneg %p83
      %p138 = scmp.lt.s32.totalorder %s13, 1
      %s139 = scalar_select %p138, %s13, 1
      %s140 = smul.addr %s139, 8
      %s141 = scalar_lea.vmem %s2, %s140
      %p142 = scmp.lt.s32.totalorder %s13, 1
      %s143 = scalar_select %p142, %s13, 1
      %s144 = smul.addr %s143, 8
      %s145 = scalar_lea.vmem %s0, %s144
      %p146 = scmp.lt.s32.totalorder %s13, 1
      %s147 = scalar_select %p146, %s13, 1
      %s148 = scalar_lea.vmem %s1, %s147
      %p149 = scmp.lt.s32.totalorder %s13, 1
      %s150 = scalar_select %p149, %s13, 1
      %s151 = smul.addr %s150, 8
      %s152 = scalar_lea.vmem %s2, %s151
      %v153 = vld [vmem:[%s145] sm:$0xff]
      %v154 = vld [vmem:[%s148] sm:$0x1]
      %v155 = vmul.f32 %v154, -2.0
      %v156 = vmul.f32 %v155, 1.442695
      %v157 = vpow.pop %v156
      %v158 = vmul.f32 %v154, %v157
      %vm159 = vcmask 57344
      %v160 = vsel %vm159, %v158, 0.0
      %161 = vadd.xlane.f32.xlu0 %v160
      %v162 = vpop.xlane.xlu0 %161
      %v163 = vrsqrt.pop %v162
      %v164 = vmul.f32 %v163, %v162
      %v165 = vmul.f32 %v164, %v163
      %v166 = vmul.f32 0.5, %v165
      %v167 = vsub.f32 1.5, %v166
      %v168 = vmul.f32 %v163, %v167
      %v169 = vmul.f32 %v162, %v168
      %vm170 = vcmp.eq.f32.partialorder %v162, inf
      %v171 = vsel %vm170, %v162, %v169
      %vm172 = vcmp.eq.f32.partialorder %v162, 0.0
      %v173 = vand.u32 %v162, 2147483648
      %v174 = vsel %vm172, %v173, %v171
      %v175 = vmax.f32 %v174, 1e-12
      %v176 = vrsqrt.pop %v154
      %v177 = vmul.f32 %v176, %v154
      %v178 = vmul.f32 %v177, %v176
      %v179 = vmul.f32 0.5, %v178
      %v180 = vsub.f32 1.5, %v179
      %v181 = vmul.f32 %v176, %v180
      %v182 = vmul.f32 %v154, %v181
      %vm183 = vcmp.eq.f32.partialorder %v154, inf
      %v184 = vsel %vm183, %v154, %v182
      %vm185 = vcmp.eq.f32.partialorder %v154, 0.0
      %v186 = vand.u32 %v154, 2147483648
      %v187 = vsel %vm185, %v186, %v184
      %v188 = vadd.f32 %v175, 1.0
      %v189 = vmul.f32 %v187, %v188
      %v191 = vperm.slane %v189, 0
      %v193 = vmul.f32 %v153, %v191
      %vm194 = vcmask 64512
      %v196 = vsel %vm194, %v193, 0
      %v199 = vsel %vm194, %v153, 0
      %201 = vmatpush.xpose.msra.mxu0 0.0
      %202 = vmatpush.xpose.msra.mxu0 0.0
      %203 = vmatpush.xpose.msra.mxu0 0.0
      %204 = vmatpush.xpose.msra.mxu0 0.0
      %205 = vmatpush.xpose.msra.mxu0 0.0
      %206 = vmatpush.xpose.msra.mxu0 0.0
      %207 = vmatpush.xpose.msra.mxu0 0.0
      %208 = vmatpush.xpose.msra.mxu0 0.0
      %209 = vmatpush.xpose.msra.mxu0 0.0
      %210 = vmatpush.xpose.msra.mxu0 0.0
      %211 = vmatpush.xpose.msra.mxu0 0.0
      %212 = vmatpush.xpose.msra.mxu0 0.0
      %213 = vmatpush.xpose.msra.mxu0 0.0
      %214 = vmatpush.xpose.msra.mxu0 0.0
      %215 = vmatpush.xpose.msra.mxu0 0.0
      %216 = vmatpush.xpose.msra.mxu0 %v199
      %217 = vmatmul.f32.gmra.mxu0 %v196
      %v218 = vpop.f32.mrf.mxu0
      %v219 = vadd.f32 0.0, %v218
      %220 = vdwg.mxu0
      %221 = vst.msk [vmem:[%s152] sm:$0xff] %vm194, %v219
      %p222 = scmp.lt.s32.totalorder %s13, 1
      %s223 = scalar_select %p222, %s13, 1
      %s224 = smul.addr %s223, 8
      %s225 = scalar_lea.vmem %s2, %s224
      // Predicated region
      $region29: #{seb_forward.3} parent=27 // pred_check
        %p226 = pneg %p83
      $region30: #{seb_forward.3} parent=27 // pred_check_branch
        %228 = sbr.rel (%p226) target = $region32
      $region31: #{seb_forward.3} parent=27 // pred_region
        _
      $region32: #{seb_forward.3} parent=27 // pred_fallthru
        _
    $region28: #{seb_forward.3} parent=5 // pred_fallthru
      _
    %p229 = scmp.le.s32.totalorder 2, %s8
    // Predicated region
    $region33: #{seb_forward.3} parent=5 // pred_check
      %p230 = pneg %p229
    $region34: #{seb_forward.3} parent=5 // pred_check_branch
      %232 = sbr.rel (%p230) target = $region36
    $region35: #{seb_forward.3} parent=5 // pred_region
      %s233 = ssub.s32 %s8, 2
      // Predicated region
      $region37: #{seb_forward.3} parent=35 // pred_check
        %p234 = pneg %p89
      $region38: #{seb_forward.3} parent=35 // pred_check_branch
        %236 = sbr.rel (%p234) target = $region40
      $region39: #{seb_forward.3} parent=35 // pred_region
        %p237 = scmp.lt.s32.totalorder %s14, 1
        %s238 = scalar_select %p237, %s14, 1
        %s239 = smul.addr %s238, 8
        %s240 = scalar_lea.vmem %s2, %s239
      $region40: #{seb_forward.3} parent=35 // pred_fallthru
        _
    $region36: #{seb_forward.3} parent=5 // pred_fallthru
      _
  $region6: #{seb_forward.3} parent=0 // loop_footer
    %s12 = sadd.s32 1, %s8
  $region7: #{seb_forward.3} parent=0 // loop_footer_branch
    %7 = sbr.rel target = $region3
  $region8: #{seb_forward.3} parent=0 // loop_exit
    _

</llo_original>
